<compile_context>
chip_gen: v7x
topology: tpu7x:2x2x1
jax: 0.10.0
libtpu: 0.0.40
codegen_flags: <defaults>
</compile_context>

<pallas_src>
import functools

import jax
import jax.numpy as jnp
from jax import lax
from jax.experimental import pallas as pl
from jax.experimental.pallas import tpu as pltpu


def _attention_kernel(x_ref, wqT_ref, wkT_ref, wvT_ref, wp_ref, b_ref, o_ref,
                      *, num_heads, head_dim, seq_len, seq_pad, exact_softmax):
    """One grid step = one batch item (seq_pad rows of the flattened input)."""
    H, hd = num_heads, head_dim
    C = H * hd

    x = x_ref[...]                                            # (S, C) bf16

    # --- QKV projection: three wide matmuls (contraction = C), produced in
    # transposed orientation (C, S) so heads land on the SUBLANE axis.
    #   qT[c, n] = sum_ci wq[ci, c] * x[n, ci]   (trans_b form: contract last dims)
    def proj_t(w_ref):
        return lax.dot_general(w_ref[...], x, (((1,), (1,)), ((), ())),
                               preferred_element_type=jnp.float32)   # (C, S) f32

    qT = proj_t(wqT_ref)          # attention scale already folded into wqT
    kT = proj_t(wkT_ref)
    vT = proj_t(wvT_ref)

    # --- Head split: (C, S) -> (H, hd, S).  hd % 8 == 0 keeps this a pure
    # sublane-aligned reinterpretation (no per-head lane extracts, no XLU).
    q3 = qT.reshape(H, hd, seq_pad)
    k3 = kT.reshape(H, hd, seq_pad)
    v3 = vT.reshape(H, hd, seq_pad)

    # One batched minor-2D transpose (XLU slot, overlaps with MXU) to put q in
    # (H, S, hd); k/v are consumed in their transposed layout directly.
    q3t = jnp.transpose(q3, (0, 2, 1))                        # (H, S, hd) f32

    # --- Scores: (H, S, hd) @ (H, hd, S) -> (H, S, S), canonical batched form.
    s = lax.dot_general(q3t.astype(jnp.bfloat16), k3.astype(jnp.bfloat16),
                        (((2,), (1,)), ((0,), (0,))),
                        preferred_element_type=jnp.float32)   # (H, S, S) f32

    # Mask padded key columns (emitted only when padding exists; static branch).
    if seq_pad != seq_len:
        col = lax.broadcasted_iota(jnp.int32, s.shape, 2)
        s = jnp.where(col < seq_len, s, -1e30)

    # --- Softmax in f32 (VPU/EUP).
    s = s - jnp.max(s, axis=-1, keepdims=True)
    p = jnp.exp(s)
    l = jnp.sum(p, axis=-1, keepdims=True)                    # (H, S, 1)
    if exact_softmax:
        p = p / l
    else:
        p = p * pl.reciprocal(l, approx=True)                 # EUP slot
    p16 = p.astype(jnp.bfloat16)

    # --- attn @ v, computed transposed so heads stay on sublanes:
    #   pvT[h, d, n] = sum_m v3[h, d, m] * p[h, n, m]   (contract last dims)
    pvT = lax.dot_general(v3.astype(jnp.bfloat16), p16,
                          (((2,), (2,)), ((0,), (0,))),
                          preferred_element_type=jnp.float32)  # (H, hd, S) f32

    # Merge heads back onto the channel (sublane) axis -- still layout-free --
    # then a single 2D transpose to a lane-dense (S, C) activation.
    attnT = pvT.reshape(C, seq_pad)                            # (C, S) f32
    attn = jnp.transpose(attnT).astype(jnp.bfloat16)           # (S, C) bf16

    # --- Output projection: wide matmul (contraction = C) + bias.
    out = jnp.dot(attn, wp_ref[...], preferred_element_type=jnp.float32)
    out = out + b_ref[...]
    o_ref[...] = out.astype(o_ref.dtype)                       # lane-dense store
    # attn_drop / proj_drop have p = 0.0 in the reference module -> identity.


def _round_up(x, m):
    return (x + m - 1) // m * m


def attention_forward(x, w_qkv, w_proj, b_proj, *, num_heads, qk_scale=None,
                      out_dtype=None, exact_softmax=False,
                      vmem_limit_bytes=48 * 1024 * 1024):
    """T2T-ViT Attention forward.

    x: (B, N, C); w_qkv: (C, 3C) with columns [q | k | v]; w_proj: (C, C);
    b_proj: (C,) or (1, C).  Returns (B, N, C).
    """
    B, N, C = x.shape
    assert C % num_heads == 0, "C must be divisible by num_heads"
    head_dim = C // num_heads
    assert head_dim % 8 == 0, "head_dim must be a multiple of 8 (sublane tile)"
    scale = qk_scale if qk_scale is not None else head_dim ** (-0.5)

    # Split the fused qkv weight and pre-transpose to (out, in) on the host so
    # the kernel's QKV matmuls are trans_b contractions over C.  The attention
    # scale is folded into the q weights (free at trace time).
    w_q, w_k, w_v = w_qkv[:, :C], w_qkv[:, C:2 * C], w_qkv[:, 2 * C:]
    wqT = (w_q * scale).T.astype(jnp.bfloat16)               # (C, C)
    wkT = w_k.T.astype(jnp.bfloat16)
    wvT = w_v.T.astype(jnp.bfloat16)
    wp = w_proj.astype(jnp.bfloat16)                          # (C, C), (in, out)
    b = b_proj.reshape(1, C).astype(jnp.float32)

    # Pad the sequence to a sublane/bf16-friendly multiple; padded key columns
    # are masked inside the kernel, padded query rows are dropped afterwards.
    N_pad = _round_up(N, 16)
    x_p = jnp.pad(x, ((0, 0), (0, N_pad - N), (0, 0))) if N_pad != N else x
    x_flat = x_p.reshape(B * N_pad, C).astype(jnp.bfloat16)

    out_dtype = out_dtype or x.dtype

    kernel = functools.partial(_attention_kernel, num_heads=num_heads,
                               head_dim=head_dim, seq_len=N, seq_pad=N_pad,
                               exact_softmax=exact_softmax)

    # NOTE(perf): on v5e/v6e (128 MiB VMEM) several images can be packed per
    # step and vmem_limit raised to ~96 MiB; on v7x keep this tile size and
    # consider pipeline_mode=pl.Buffered(1) on the grid-invariant weight specs.
    # TODO(synk): optional multi-image tiles / fp8 weights for v7x.
    out_flat = pl.pallas_call(
        kernel,
        out_shape=jax.ShapeDtypeStruct((B * N_pad, C), out_dtype),
        grid_spec=pltpu.PrefetchScalarGridSpec(
            num_scalar_prefetch=0,
            grid=(B,),
            in_specs=[
                pl.BlockSpec((N_pad, C), lambda i: (i, 0)),   # x tile (one image)
                pl.BlockSpec((C, C), lambda i: (0, 0)),       # wqT (grid-invariant)
                pl.BlockSpec((C, C), lambda i: (0, 0)),       # wkT
                pl.BlockSpec((C, C), lambda i: (0, 0)),       # wvT
                pl.BlockSpec((C, C), lambda i: (0, 0)),       # w_proj
                pl.BlockSpec((1, C), lambda i: (0, 0)),       # proj bias
            ],
            out_specs=pl.BlockSpec((N_pad, C), lambda i: (i, 0)),
        ),
        compiler_params=pltpu.CompilerParams(
            dimension_semantics=("parallel",),
            vmem_limit_bytes=vmem_limit_bytes,
        ),
    )(x_flat, wqT, wkT, wvT, wp, b)

    out = out_flat.reshape(B, N_pad, C)
    if N_pad != N:
        out = out[:, :N, :]
    return out


def attention_reference(x, w_qkv, w_proj, b_proj, *, num_heads):
    """Pure-JAX f32 reference mirroring the PyTorch forward pass."""
    B, N, C = x.shape
    head_dim = C // num_heads
    scale = head_dim ** (-0.5)
    qkv = x @ w_qkv                                   # (B, N, 3C)
    qkv = qkv.reshape(B, N, 3, num_heads, head_dim).transpose(2, 0, 3, 1, 4)
    q, k, v = qkv[0], qkv[1], qkv[2]                  # (B, H, N, hd)
    attn = jnp.einsum("bhnd,bhmd->bhnm", q, k) * scale
    attn = jax.nn.softmax(attn, axis=-1)
    out = jnp.einsum("bhnm,bhmd->bhnd", attn, v)      # (B, H, N, hd)
    out = out.transpose(0, 2, 1, 3).reshape(B, N, C)
    return out @ w_proj + b_proj.reshape(1, C)


if __name__ == "__main__":
    # Small deterministic problem: B=2, N=12 tokens (padded to 16 inside, so the
    # key-mask path is exercised), C=128 channels, 8 heads (hd=16).
    B, N, C, num_heads = 2, 12, 128, 8

    key = jax.random.PRNGKey(0)
    kx, kqkv, kproj, kb = jax.random.split(key, 4)

    x = jax.random.normal(kx, (B, N, C), dtype=jnp.float32)
    # nn.Linear(dim, 3*dim, bias=False) -> weight (C, 3C) in (in, out) layout
    w_qkv = jax.random.normal(kqkv, (C, 3 * C), dtype=jnp.float32) * 0.1
    # nn.Linear(dim, dim)               -> weight (C, C) + bias (1, C)
    w_proj = jax.random.normal(kproj, (C, C), dtype=jnp.float32) * 0.1
    b_proj = jax.random.normal(kb, (1, C), dtype=jnp.float32) * 0.1

    out = attention_forward(x, w_qkv, w_proj, b_proj, num_heads=num_heads)
    out = jax.block_until_ready(out)

    ref = attention_reference(x, w_qkv, w_proj, b_proj, num_heads=num_heads)
    assert out.shape == (B, N, C)
    # bf16 MXU operands + approx reciprocal -> compare at ~5e-2 tolerance.
    max_err = jnp.max(jnp.abs(out - ref))
    assert jnp.allclose(out, ref, atol=5e-2, rtol=5e-2), \
        f"mismatch vs reference (max |err| = {max_err})"

    print("KERNEL_OK")
</pallas_src>

<mosaic_0001>
module attributes {stable_mosaic.version = 11 : i64} {
  func.func @_attention_kernel(%arg0: i32, %arg1: memref<16x128xbf16, #tpu.memory_space<vmem>>, %arg2: memref<128x128xbf16, #tpu.memory_space<vmem>>, %arg3: memref<128x128xbf16, #tpu.memory_space<vmem>>, %arg4: memref<128x128xbf16, #tpu.memory_space<vmem>>, %arg5: memref<128x128xbf16, #tpu.memory_space<vmem>>, %arg6: memref<1x128xf32, #tpu.memory_space<vmem>>, %arg7: memref<16x128xf32, #tpu.memory_space<vmem>>) attributes {dimension_semantics = [#tpu.dimension_semantics<parallel>], iteration_bounds = array<i64: 2>, scalar_prefetch = 0 : i64, scratch_operands = 0 : i64, tpu.core_type = #tpu.core_type<tc>, window_params = [{transform_indices = @transform_0, window_bounds = array<i64: 16, 128>}, {pipeline_mode = #tpu.pipeline_mode<synchronous>, transform_indices = @transform_1, window_bounds = array<i64: 128, 128>}, {pipeline_mode = #tpu.pipeline_mode<synchronous>, transform_indices = @transform_2, window_bounds = array<i64: 128, 128>}, {pipeline_mode = #tpu.pipeline_mode<synchronous>, transform_indices = @transform_3, window_bounds = array<i64: 128, 128>}, {pipeline_mode = #tpu.pipeline_mode<synchronous>, transform_indices = @transform_4, window_bounds = array<i64: 128, 128>}, {pipeline_mode = #tpu.pipeline_mode<synchronous>, transform_indices = @transform_5, window_bounds = array<i64: 1, 128>}, {transform_indices = @transform_6, window_bounds = array<i64: 16, 128>}]} {
    %c0 = arith.constant 0 : index
    %c0_0 = arith.constant 0 : index
    %0 = vector.load %arg1[%c0, %c0_0] : memref<16x128xbf16, #tpu.memory_space<vmem>>, vector<16x128xbf16>
    %c0_1 = arith.constant 0 : index
    %c0_2 = arith.constant 0 : index
    %1 = vector.load %arg2[%c0_1, %c0_2] : memref<128x128xbf16, #tpu.memory_space<vmem>>, vector<128x128xbf16>
    %cst = arith.constant dense<0.000000e+00> : vector<128x16xf32>
    %2 = tpu.matmul %1, %0, %cst {dimension_numbers = #tpu.dot_dimension_numbers<[1], [1], [0], [0], [0, 0, 1, 0], [], []>} : vector<128x128xbf16>, vector<16x128xbf16>, vector<128x16xf32> -> vector<128x16xf32>
    %c0_3 = arith.constant 0 : index
    %c0_4 = arith.constant 0 : index
    %3 = vector.load %arg3[%c0_3, %c0_4] : memref<128x128xbf16, #tpu.memory_space<vmem>>, vector<128x128xbf16>
    %cst_5 = arith.constant dense<0.000000e+00> : vector<128x16xf32>
    %4 = tpu.matmul %3, %0, %cst_5 {dimension_numbers = #tpu.dot_dimension_numbers<[1], [1], [0], [0], [0, 0, 1, 0], [], []>} : vector<128x128xbf16>, vector<16x128xbf16>, vector<128x16xf32> -> vector<128x16xf32>
    %c0_6 = arith.constant 0 : index
    %c0_7 = arith.constant 0 : index
    %5 = vector.load %arg4[%c0_6, %c0_7] : memref<128x128xbf16, #tpu.memory_space<vmem>>, vector<128x128xbf16>
    %cst_8 = arith.constant dense<0.000000e+00> : vector<128x16xf32>
    %6 = tpu.matmul %5, %0, %cst_8 {dimension_numbers = #tpu.dot_dimension_numbers<[1], [1], [0], [0], [0, 0, 1, 0], [], []>} : vector<128x128xbf16>, vector<16x128xbf16>, vector<128x16xf32> -> vector<128x16xf32>
    %7 = vector.shape_cast %2 : vector<128x16xf32> to vector<8x16x16xf32>
    %8 = vector.shape_cast %4 : vector<128x16xf32> to vector<8x16x16xf32>
    %9 = vector.shape_cast %6 : vector<128x16xf32> to vector<8x16x16xf32>
    %10 = tpu.transpose %7, [0, 2, 1] : vector<8x16x16xf32> -> vector<8x16x16xf32>
    %11 = arith.truncf %10 : vector<8x16x16xf32> to vector<8x16x16xbf16>
    %12 = arith.truncf %8 : vector<8x16x16xf32> to vector<8x16x16xbf16>
    %cst_9 = arith.constant dense<0.000000e+00> : vector<8x16x16xf32>
    %13 = tpu.matmul %11, %12, %cst_9 {dimension_numbers = #tpu.dot_dimension_numbers<[2], [1], [1], [2], [0, 0, 0, 1, 1, 2], [0], [0]>} : vector<8x16x16xbf16>, vector<8x16x16xbf16>, vector<8x16x16xf32> -> vector<8x16x16xf32>
    %14 = tpu.iota {dimensions = array<i32: 2>} : vector<8x16x16xi32>
    %c12_i32 = arith.constant 12 : i32
    %15 = vector.broadcast %c12_i32 : i32 to vector<8x16x16xi32>
    %16 = arith.cmpi slt, %14, %15 : vector<8x16x16xi32>
    %cst_10 = arith.constant -1.000000e+30 : f32
    %17 = vector.broadcast %cst_10 : f32 to vector<8x16x16xf32>
    %18 = arith.select %16, %13, %17 : vector<8x16x16xi1>, vector<8x16x16xf32>
    %cst_11 = arith.constant dense<0xFF800000> : vector<8x16xf32>
    %19 = vector.multi_reduction <maximumf>, %18, %cst_11 [2] : vector<8x16x16xf32> to vector<8x16xf32>
    %20 = vector.shape_cast %19 : vector<8x16xf32> to vector<8x16x1xf32>
    %21 = vector.broadcast %20 : vector<8x16x1xf32> to vector<8x16x16xf32>
    %22 = arith.subf %18, %21 : vector<8x16x16xf32>
    %23 = math.exp %22 : vector<8x16x16xf32>
    %cst_12 = arith.constant dense<0.000000e+00> : vector<8x16xf32>
    %24 = vector.multi_reduction <add>, %23, %cst_12 [2] : vector<8x16x16xf32> to vector<8x16xf32>
    %25 = vector.shape_cast %24 : vector<8x16xf32> to vector<8x16x1xf32>
    %26 = tpu.reciprocal %25 {approx = true} : vector<8x16x1xf32> -> vector<8x16x1xf32>
    %27 = vector.broadcast %26 : vector<8x16x1xf32> to vector<8x16x16xf32>
    %28 = arith.mulf %23, %27 : vector<8x16x16xf32>
    %29 = arith.truncf %28 : vector<8x16x16xf32> to vector<8x16x16xbf16>
    %30 = arith.truncf %9 : vector<8x16x16xf32> to vector<8x16x16xbf16>
    %cst_13 = arith.constant dense<0.000000e+00> : vector<8x16x16xf32>
    %31 = tpu.matmul %30, %29, %cst_13 {dimension_numbers = #tpu.dot_dimension_numbers<[2], [2], [1], [1], [0, 0, 0, 1, 1, 1], [0], [0]>} : vector<8x16x16xbf16>, vector<8x16x16xbf16>, vector<8x16x16xf32> -> vector<8x16x16xf32>
    %32 = vector.shape_cast %31 : vector<8x16x16xf32> to vector<128x16xf32>
    %33 = tpu.transpose %32, [1, 0] : vector<128x16xf32> -> vector<16x128xf32>
    %34 = arith.truncf %33 : vector<16x128xf32> to vector<16x128xbf16>
    %c0_14 = arith.constant 0 : index
    %c0_15 = arith.constant 0 : index
    %35 = vector.load %arg5[%c0_14, %c0_15] : memref<128x128xbf16, #tpu.memory_space<vmem>>, vector<128x128xbf16>
    %cst_16 = arith.constant dense<0.000000e+00> : vector<16x128xf32>
    %36 = tpu.matmul %34, %35, %cst_16 {dimension_numbers = #tpu.dot_dimension_numbers<[1], [0], [0], [1], [0, 0, 1, 1], [], []>} : vector<16x128xbf16>, vector<128x128xbf16>, vector<16x128xf32> -> vector<16x128xf32>
    %c0_17 = arith.constant 0 : index
    %c0_18 = arith.constant 0 : index
    %37 = vector.load %arg6[%c0_17, %c0_18] : memref<1x128xf32, #tpu.memory_space<vmem>>, vector<1x128xf32>
    %38 = vector.broadcast %37 : vector<1x128xf32> to vector<16x128xf32>
    %39 = arith.addf %36, %38 : vector<16x128xf32>
    %c0_19 = arith.constant 0 : index
    %c0_20 = arith.constant 0 : index
    %40 = vector.load %arg7[%c0_19, %c0_20] : memref<16x128xf32, #tpu.memory_space<vmem>>, vector<16x128xf32>
    tpu.vector_store %arg7[%c0_19, %c0_20], %39 {strides = array<i32>} : memref<16x128xf32, #tpu.memory_space<vmem>>, vector<16x128xf32>,
    return
  }
  func.func @transform_0(%arg0: i32) -> (i32, i32) {
    %c0_i32 = arith.constant 0 : i32
    %c0_i32_0 = arith.constant 0 : i32
    return %arg0, %c0_i32 : i32, i32
  }
  func.func @transform_1(%arg0: i32) -> (i32, i32) {
    %c0_i32 = arith.constant 0 : i32
    %c0_i32_0 = arith.constant 0 : i32
    %c0_i32_1 = arith.constant 0 : i32
    return %c0_i32, %c0_i32_0 : i32, i32
  }
  func.func @transform_2(%arg0: i32) -> (i32, i32) {
    %c0_i32 = arith.constant 0 : i32
    %c0_i32_0 = arith.constant 0 : i32
    %c0_i32_1 = arith.constant 0 : i32
    return %c0_i32, %c0_i32_0 : i32, i32
  }
  func.func @transform_3(%arg0: i32) -> (i32, i32) {
    %c0_i32 = arith.constant 0 : i32
    %c0_i32_0 = arith.constant 0 : i32
    %c0_i32_1 = arith.constant 0 : i32
    return %c0_i32, %c0_i32_0 : i32, i32
  }
  func.func @transform_4(%arg0: i32) -> (i32, i32) {
    %c0_i32 = arith.constant 0 : i32
    %c0_i32_0 = arith.constant 0 : i32
    %c0_i32_1 = arith.constant 0 : i32
    return %c0_i32, %c0_i32_0 : i32, i32
  }
  func.func @transform_5(%arg0: i32) -> (i32, i32) {
    %c0_i32 = arith.constant 0 : i32
    %c0_i32_0 = arith.constant 0 : i32
    %c0_i32_1 = arith.constant 0 : i32
    return %c0_i32, %c0_i32_0 : i32, i32
  }
  func.func @transform_6(%arg0: i32) -> (i32, i32) {
    %c0_i32 = arith.constant 0 : i32
    %c0_i32_0 = arith.constant 0 : i32
    return %arg0, %c0_i32 : i32, i32
  }
}

</mosaic_0001>

<llo_original>
// kernel: tpu_custom_call.1
$region0: #{tpu_custom_call.1}
  #allocation0 [shape = 'u32[]', space=smem, size = 0x4, offset = 0x4, fixed_abs, tag = 'smem constant byte address 0x4 - core index']
  #allocation1 [shape = 'u32[144,128]{1,0:T(1,128)}', space=vmem, size = 0x12000, scoped, tag = 'internal scratch']
  %s0 = inlined_call_operand.hbm [shape: bf16[32,128], index: 0, kind: input, shape index: {}]
  %s1 = inlined_call_operand.hbm [shape: bf16[128,128], index: 1, kind: input, shape index: {}]
  %s2 = inlined_call_operand.hbm [shape: bf16[128,128], index: 2, kind: input, shape index: {}]
  %s3 = inlined_call_operand.hbm [shape: bf16[128,128], index: 3, kind: input, shape index: {}]
  %s4 = inlined_call_operand.hbm [shape: bf16[128,128], index: 4, kind: input, shape index: {}]
  %s5 = inlined_call_operand.vmem [shape: f32[1,128], index: 5, kind: input, shape index: {}]
  %s6 = inlined_call_operand.hbm [shape: f32[32,128], index: 6, kind: output, shape index: {}]
  %s7 = sld [smem:[#allocation0]]
  $region77: #{tpu_custom_call.1} parent=0
    _
  %s9 = ssub.s32 1, %s7
  %s10 = scalar_select 0, %s9, %s7
  $region1: #{tpu_custom_call.1} parent=0
    #allocation2 [shape = 'u8[8192]{0}', space=vmem, size = 0x2000, scoped, tag = 'input window, operand 0']
    #allocation3 [shape = 's32[2]{0}', space=sflag, size = 0x8, scoped, tag = 'scoped memory for tpu_custom_call.1']
    #allocation4 [shape = 's32[2]{0}', space=sflag, size = 0x8, scoped, tag = 'scoped memory for tpu_custom_call.1']
    #allocation5 [shape = 'u8[32768]{0}', space=vmem, size = 0x8000, scoped, tag = 'input window, operand 1, single buffered']
    #allocation6 [shape = 's32[1]{0}', space=sflag, size = 0x4, scoped, tag = 'scoped memory for tpu_custom_call.1']
    #allocation7 [shape = 'u8[32768]{0}', space=vmem, size = 0x8000, scoped, tag = 'input window, operand 2, single buffered']
    #allocation8 [shape = 'u8[32768]{0}', space=vmem, size = 0x8000, scoped, tag = 'input window, operand 3, single buffered']
    #allocation9 [shape = 's32[1]{0}', space=sflag, size = 0x4, scoped, tag = 'scoped memory for tpu_custom_call.1']
    #allocation10 [shape = 'u8[32768]{0}', space=vmem, size = 0x8000, scoped, tag = 'input window, operand 4, single buffered']
    #allocation11 [shape = 'u8[16384]{0}', space=vmem, size = 0x4000, scoped, tag = 'output window, operand 0']
    %11 = vsyncpa [#allocation3], 0
    %s12 = scalar_lea.sflag [#allocation3], 1
    %13 = vsyncpa %s12, 0
    %14 = vsyncpa [#allocation6], 0
    %15 = vsyncpa [#allocation9], 0
    %16 = vsyncpa [#allocation4], 0
    %s17 = scalar_lea.sflag [#allocation4], 1
    %18 = vsyncpa %s17, 0
    loop: start=0, step=1, limit=4
    $region2: #{tpu_custom_call.1} parent=1 // loop_pre_header
      _
    $region3: #{tpu_custom_call.1} parent=1 // loop_header
      %s20 = sphi 0, %s24
      %p21 = scmp.ge.s32.totalorder %s20, 4
      %s30 = sphi 0, %s32
      %s33 = sphi 0, %s30
      %s34 = sphi 0, %s33
      %s50 = sphi 0, %s34
      %s54 = sphi 0, %s54
      %s56 = sphi 0, %s54
      %s57 = sphi 0, %s56
      %s71 = sphi 0, %s57
      %s75 = sphi 0, %s75
      %s77 = sphi 0, %s75
      %s78 = sphi 0, %s77
      %s92 = sphi 0, %s78
      %s96 = sphi 0, %s96
      %s98 = sphi 0, %s96
      %s99 = sphi 0, %s98
      %s113 = sphi 0, %s99
      %s117 = sphi 0, %s117
      %s119 = sphi 0, %s117
      %s120 = sphi 0, %s119
      %s134 = sphi 0, %s120
      %s138 = sphi 0, %s138
      %s140 = sphi 0, %s138
      %s141 = sphi 0, %s140
      %s155 = sphi 0, %s141
      %s161 = sphi 0, %s163
      %s164 = sphi 0, %s161
      %s165 = sphi 0, %s164
      %s181 = sphi 0, %s165
    $region4: #{tpu_custom_call.1} parent=1 // loop_header_branch
      %23 = sbr.rel (%p21) target = $region8
    $region5: #{tpu_custom_call.1} parent=1 // loop_body
      %s25 = ssub.s32 %s20, 1
      %s26 = ssub.s32 %s20, 2
      %s27 = sadd.s32 %s20, 1
      %s28 = ssub.s32 %s20, %s27
      %p29 = scmp.eq.s32.totalorder %s28, 0
      %s31 = sadd.s32 %s30, 1
      %s32 = scalar_select %p29, %s30, %s31
      %p35 = pneg %p29
      %p36 = scmp.eq.s32.totalorder %s20, 1
      %p37 = por %p35, %p36
      %p38 = scmp.ne.s32.totalorder %s30, %s33
      %p39 = scmp.eq.s32.totalorder %s20, 0
      %p40 = por %p38, %p39
      %p41 = scmp.ne.s32.totalorder %s30, %s33
      %p42 = scmp.eq.s32.totalorder %s25, 1
      %p43 = por %p41, %p42
      %p44 = scmp.ne.s32.totalorder %s33, %s34
      %p45 = scmp.eq.s32.totalorder %s25, 0
      %p46 = por %p44, %p45
      %p47 = scmp.ne.s32.totalorder %s33, %s34
      %p48 = scmp.eq.s32.totalorder %s26, 1
      %p49 = por %p47, %p48
      %p51 = scmp.ne.s32.totalorder %s34, %s50
      %p52 = scmp.eq.s32.totalorder %s26, 0
      %p53 = por %p51, %p52
      %s55 = sadd.s32 %s54, 1
      %p58 = scmp.eq.s32.totalorder %s20, 1
      %p59 = scmp.ne.s32.totalorder %s54, %s56
      %p60 = scmp.eq.s32.totalorder %s20, 0
      %p61 = por %p59, %p60
      %p62 = scmp.ne.s32.totalorder %s54, %s56
      %p63 = scmp.eq.s32.totalorder %s25, 1
      %p64 = por %p62, %p63
      %p65 = scmp.ne.s32.totalorder %s56, %s57
      %p66 = scmp.eq.s32.totalorder %s25, 0
      %p67 = por %p65, %p66
      %p68 = scmp.ne.s32.totalorder %s56, %s57
      %p69 = scmp.eq.s32.totalorder %s26, 1
      %p70 = por %p68, %p69
      %p72 = scmp.ne.s32.totalorder %s57, %s71
      %p73 = scmp.eq.s32.totalorder %s26, 0
      %p74 = por %p72, %p73
      %s76 = sadd.s32 %s75, 1
      %p79 = scmp.eq.s32.totalorder %s20, 1
      %p80 = scmp.ne.s32.totalorder %s75, %s77
      %p81 = scmp.eq.s32.totalorder %s20, 0
      %p82 = por %p80, %p81
      %p83 = scmp.ne.s32.totalorder %s75, %s77
      %p84 = scmp.eq.s32.totalorder %s25, 1
      %p85 = por %p83, %p84
      %p86 = scmp.ne.s32.totalorder %s77, %s78
      %p87 = scmp.eq.s32.totalorder %s25, 0
      %p88 = por %p86, %p87
      %p89 = scmp.ne.s32.totalorder %s77, %s78
      %p90 = scmp.eq.s32.totalorder %s26, 1
      %p91 = por %p89, %p90
      %p93 = scmp.ne.s32.totalorder %s78, %s92
      %p94 = scmp.eq.s32.totalorder %s26, 0
      %p95 = por %p93, %p94
      %s97 = sadd.s32 %s96, 1
      %p100 = scmp.eq.s32.totalorder %s20, 1
      %p101 = scmp.ne.s32.totalorder %s96, %s98
      %p102 = scmp.eq.s32.totalorder %s20, 0
      %p103 = por %p101, %p102
      %p104 = scmp.ne.s32.totalorder %s96, %s98
      %p105 = scmp.eq.s32.totalorder %s25, 1
      %p106 = por %p104, %p105
      %p107 = scmp.ne.s32.totalorder %s98, %s99
      %p108 = scmp.eq.s32.totalorder %s25, 0
      %p109 = por %p107, %p108
      %p110 = scmp.ne.s32.totalorder %s98, %s99
      %p111 = scmp.eq.s32.totalorder %s26, 1
      %p112 = por %p110, %p111
      %p114 = scmp.ne.s32.totalorder %s99, %s113
      %p115 = scmp.eq.s32.totalorder %s26, 0
      %p116 = por %p114, %p115
      %s118 = sadd.s32 %s117, 1
      %p121 = scmp.eq.s32.totalorder %s20, 1
      %p122 = scmp.ne.s32.totalorder %s117, %s119
      %p123 = scmp.eq.s32.totalorder %s20, 0
      %p124 = por %p122, %p123
      %p125 = scmp.ne.s32.totalorder %s117, %s119
      %p126 = scmp.eq.s32.totalorder %s25, 1
      %p127 = por %p125, %p126
      %p128 = scmp.ne.s32.totalorder %s119, %s120
      %p129 = scmp.eq.s32.totalorder %s25, 0
      %p130 = por %p128, %p129
      %p131 = scmp.ne.s32.totalorder %s119, %s120
      %p132 = scmp.eq.s32.totalorder %s26, 1
      %p133 = por %p131, %p132
      %p135 = scmp.ne.s32.totalorder %s120, %s134
      %p136 = scmp.eq.s32.totalorder %s26, 0
      %p137 = por %p135, %p136
      %s139 = sadd.s32 %s138, 1
      %p142 = scmp.eq.s32.totalorder %s20, 1
      %p143 = scmp.ne.s32.totalorder %s138, %s140
      %p144 = scmp.eq.s32.totalorder %s20, 0
      %p145 = por %p143, %p144
      %p146 = scmp.ne.s32.totalorder %s138, %s140
      %p147 = scmp.eq.s32.totalorder %s25, 1
      %p148 = por %p146, %p147
      %p149 = scmp.ne.s32.totalorder %s140, %s141
      %p150 = scmp.eq.s32.totalorder %s25, 0
      %p151 = por %p149, %p150
      %p152 = scmp.ne.s32.totalorder %s140, %s141
      %p153 = scmp.eq.s32.totalorder %s26, 1
      %p154 = por %p152, %p153
      %p156 = scmp.ne.s32.totalorder %s141, %s155
      %p157 = scmp.eq.s32.totalorder %s26, 0
      %p158 = por %p156, %p157
      %s159 = ssub.s32 %s20, %s27
      %p160 = scmp.eq.s32.totalorder %s159, 0
      %s162 = sadd.s32 %s161, 1
      %s163 = scalar_select %p160, %s161, %s162
      %p166 = pneg %p160
      %p167 = scmp.eq.s32.totalorder %s20, 1
      %p168 = por %p166, %p167
      %p169 = scmp.ne.s32.totalorder %s161, %s164
      %p170 = scmp.eq.s32.totalorder %s20, 0
      %p171 = por %p169, %p170
      %p172 = scmp.ne.s32.totalorder %s161, %s164
      %p173 = scmp.eq.s32.totalorder %s25, 1
      %p174 = por %p172, %p173
      %p175 = scmp.ne.s32.totalorder %s164, %s165
      %p176 = scmp.eq.s32.totalorder %s25, 0
      %p177 = por %p175, %p176
      %p178 = scmp.ne.s32.totalorder %s164, %s165
      %p179 = scmp.eq.s32.totalorder %s26, 1
      %p180 = por %p178, %p179
      %p182 = scmp.ne.s32.totalorder %s165, %s181
      %p183 = scmp.eq.s32.totalorder %s26, 0
      %p184 = por %p182, %p183
      %p185 = scmp.le.s32.totalorder 1, %s20
      %p186 = scmp.lt.s32.totalorder %s20, 3
      %p187 = pnand %p185, %p186
      %p188 = pneg %p187
      // Predicated region
      $region9: #{tpu_custom_call.1} parent=5 // pred_check
        _
      $region10: #{tpu_custom_call.1} parent=5 // pred_check_branch
        %190 = sbr.rel (%p187) target = $region12
      $region11: #{tpu_custom_call.1} parent=5 // pred_region
        %s191 = ssub.s32 %s20, 1
        // Predicated region
        $region13: #{tpu_custom_call.1} parent=11 // pred_check
          %p192 = pneg %p67
        $region14: #{tpu_custom_call.1} parent=11 // pred_check_branch
          %194 = sbr.rel (%p192) target = $region16
        $region15: #{tpu_custom_call.1} parent=11 // pred_region
          %s196 = ssub.s32 1024, 1024
          %197 = vsyncadd [#allocation6], %s196
          %s198 = sshll.u32 [#allocation5], 4
          %s199 = int_to_ptr.vmem [resolvable:$true] %s198
          %204 = dma.hbm_to_vmem [thread:$0]  %s1, 1024, %s199, [#allocation6], 64, 64, 4
        $region16: #{tpu_custom_call.1} parent=11 // pred_fallthru
          _
        // Predicated region
        $region17: #{tpu_custom_call.1} parent=11 // pred_check
          %p205 = pneg %p88
        $region18: #{tpu_custom_call.1} parent=11 // pred_check_branch
          %207 = sbr.rel (%p205) target = $region20
        $region19: #{tpu_custom_call.1} parent=11 // pred_region
          %s209 = ssub.s32 1024, 1024
          %210 = vsyncadd [#allocation6], %s209
          %s211 = sshll.u32 [#allocation7], 4
          %s212 = int_to_ptr.vmem [resolvable:$true] %s211
          %217 = dma.hbm_to_vmem [thread:$0]  %s2, 1024, %s212, [#allocation6], 64, 64, 4
        $region20: #{tpu_custom_call.1} parent=11 // pred_fallthru
          _
        // Predicated region
        $region21: #{tpu_custom_call.1} parent=11 // pred_check
          %p218 = pneg %p109
        $region22: #{tpu_custom_call.1} parent=11 // pred_check_branch
          %220 = sbr.rel (%p218) target = $region24
        $region23: #{tpu_custom_call.1} parent=11 // pred_region
          %s222 = ssub.s32 1024, 1024
          %223 = vsyncadd [#allocation9], %s222
          %s224 = sshll.u32 [#allocation8], 4
          %s225 = int_to_ptr.vmem [resolvable:$true] %s224
          %230 = dma.hbm_to_vmem [thread:$0]  %s3, 1024, %s225, [#allocation9], 64, 64, 4
        $region24: #{tpu_custom_call.1} parent=11 // pred_fallthru
          _
        // Predicated region
        $region25: #{tpu_custom_call.1} parent=11 // pred_check
          %p231 = pneg %p130
        $region26: #{tpu_custom_call.1} parent=11 // pred_check_branch
          %233 = sbr.rel (%p231) target = $region28
        $region27: #{tpu_custom_call.1} parent=11 // pred_region
          %s235 = ssub.s32 1024, 1024
          %236 = vsyncadd [#allocation9], %s235
          %s237 = sshll.u32 [#allocation10], 4
          %s238 = int_to_ptr.vmem [resolvable:$true] %s237
          %243 = dma.hbm_to_vmem [thread:$0]  %s4, 1024, %s238, [#allocation9], 64, 64, 4
        $region28: #{tpu_custom_call.1} parent=11 // pred_fallthru
          _
        // Predicated region
        $region29: #{tpu_custom_call.1} parent=11 // pred_check
          %p244 = pneg %p151
        $region30: #{tpu_custom_call.1} parent=11 // pred_check_branch
          %246 = sbr.rel (%p244) target = $region32
        $region31: #{tpu_custom_call.1} parent=11 // pred_region
          _
        $region32: #{tpu_custom_call.1} parent=11 // pred_fallthru
          _
      $region12: #{tpu_custom_call.1} parent=5 // pred_fallthru
        _
      %p247 = scmp.lt.s32.totalorder %s20, 2
      // Predicated region
      $region33: #{tpu_custom_call.1} parent=5 // pred_check
        %p248 = pneg %p247
      $region34: #{tpu_custom_call.1} parent=5 // pred_check_branch
        %250 = sbr.rel (%p248) target = $region36
      $region35: #{tpu_custom_call.1} parent=5 // pred_region
        // Predicated region
        $region37: #{tpu_custom_call.1} parent=35 // pred_check
          %p251 = pneg %p40
        $region38: #{tpu_custom_call.1} parent=35 // pred_check_branch
          %253 = sbr.rel (%p251) target = $region40
        $region39: #{tpu_custom_call.1} parent=35 // pred_region
          %s254 = sand.u32 %s30, 1
          %s255 = scalar_lea.sflag [#allocation3], %s254
          %s256 = sand.u32 %s30, 1
          %s257 = smul.addr %s256, 8
          %s258 = scalar_lea.vmem [#allocation2], %s257
          %s259 = smul.u32 2, %s20
          %s261 = ssub.s32 128, 128
          %262 = vsyncadd %s255, %s261
          %s263 = smul.addr %s259, 64
          %s264 = scalar_lea.hbm %s0, %s263
          %s265 = sshll.u32 %s258, 4
          %s266 = int_to_ptr.vmem [resolvable:$true] %s265
          %271 = dma.hbm_to_vmem [thread:$0]  %s264, 128, %s266, %s255, 64, 64, 4
        $region40: #{tpu_custom_call.1} parent=35 // pred_fallthru
          _
      $region36: #{tpu_custom_call.1} parent=5 // pred_fallthru
        _
      %p272 = scmp.le.s32.totalorder 1, %s20
      %p273 = scmp.lt.s32.totalorder %s20, 3
      %p274 = pnand %p272, %p273
      %p275 = pneg %p274
      // Predicated region
      $region41: #{tpu_custom_call.1} parent=5 // pred_check
        _
      $region42: #{tpu_custom_call.1} parent=5 // pred_check_branch
        %277 = sbr.rel (%p274) target = $region44
      $region43: #{tpu_custom_call.1} parent=5 // pred_region
        %s278 = ssub.s32 %s20, 1
        %s279 = sand.u32 %s33, 1
        %s280 = scalar_lea.sflag [#allocation3], %s279
        %s281 = sand.u32 %s33, 1
        %s282 = smul.addr %s281, 8
        %s283 = scalar_lea.vmem [#allocation2], %s282
        // Predicated region
        $region45: #{tpu_custom_call.1} parent=43 // pred_check
          %p284 = pneg %p46
        $region46: #{tpu_custom_call.1} parent=43 // pred_check_branch
          %286 = sbr.rel (%p284) target = $region48
        $region47: #{tpu_custom_call.1} parent=43 // pred_region
          %287 = dma.done %s280, 128
        $region48: #{tpu_custom_call.1} parent=43 // pred_fallthru
          _
        // Predicated region
        $region49: #{tpu_custom_call.1} parent=43 // pred_check
          %p288 = pneg %p67
        $region50: #{tpu_custom_call.1} parent=43 // pred_check_branch
          %290 = sbr.rel (%p288) target = $region52
        $region51: #{tpu_custom_call.1} parent=43 // pred_region
          %291 = dma.done [#allocation6], 1024
        $region52: #{tpu_custom_call.1} parent=43 // pred_fallthru
          _
        // Predicated region
        $region53: #{tpu_custom_call.1} parent=43 // pred_check
          %p292 = pneg %p88
        $region54: #{tpu_custom_call.1} parent=43 // pred_check_branch
          %294 = sbr.rel (%p292) target = $region56
        $region55: #{tpu_custom_call.1} parent=43 // pred_region
          %295 = dma.done [#allocation6], 1024
        $region56: #{tpu_custom_call.1} parent=43 // pred_fallthru
          _
        // Predicated region
        $region57: #{tpu_custom_call.1} parent=43 // pred_check
          %p296 = pneg %p109
        $region58: #{tpu_custom_call.1} parent=43 // pred_check_branch
          %298 = sbr.rel (%p296) target = $region60
        $region59: #{tpu_custom_call.1} parent=43 // pred_region
          %299 = dma.done [#allocation9], 1024
        $region60: #{tpu_custom_call.1} parent=43 // pred_fallthru
          _
        // Predicated region
        $region61: #{tpu_custom_call.1} parent=43 // pred_check
          %p300 = pneg %p130
        $region62: #{tpu_custom_call.1} parent=43 // pred_check_branch
          %302 = sbr.rel (%p300) target = $region64
        $region63: #{tpu_custom_call.1} parent=43 // pred_region
          %303 = dma.done [#allocation9], 1024
        $region64: #{tpu_custom_call.1} parent=43 // pred_fallthru
          _
        %s304 = sand.u32 %s33, 1
        %s305 = scalar_lea.sflag [#allocation3], %s304
        %s306 = sand.u32 %s33, 1
        %s307 = smul.addr %s306, 8
        %s308 = scalar_lea.vmem [#allocation2], %s307
        %p309 = pneg %p46
        %p310 = pneg %p43
        %p311 = pneg %p67
        %p312 = pneg %p64
        %p313 = pneg %p88
        %p314 = pneg %p85
        %p315 = pneg %p109
        %p316 = pneg %p106
        %p317 = pneg %p130
        %p318 = pneg %p127
        %p319 = pneg %p151
        %p320 = pneg %p148
        %p321 = pneg %p177
        %p322 = pneg %p174
        %s323 = sand.u32 %s164, 1
        %s324 = scalar_lea.sflag [#allocation4], %s323
        %s325 = sand.u32 %s164, 1
        %s326 = smul.addr %s325, 16
        %s327 = scalar_lea.vmem [#allocation11], %s326
        %s328 = smul.u32 2, %s25
        %s329 = smul.u32 2, %s25
        %v331 = vld [vmem:[%s283] sm:$0xf]
        %v332 = vld [vmem:[%s283 + $0x4] sm:$0xf]
        %v333 = vld [vmem:[#allocation5] sm:$0xf]
        %v334 = vld [vmem:[#allocation5 + $0x4] sm:$0xf]
        %v335 = vld [vmem:[#allocation5 + $0x8] sm:$0xf]
        %v336 = vld [vmem:[#allocation5 + $0xc] sm:$0xf]
        %v337 = vld [vmem:[#allocation5 + $0x10] sm:$0xf]
        %v338 = vld [vmem:[#allocation5 + $0x14] sm:$0xf]
        %v339 = vld [vmem:[#allocation5 + $0x18] sm:$0xf]
        %v340 = vld [vmem:[#allocation5 + $0x1c] sm:$0xf]
        %v341 = vld [vmem:[#allocation5 + $0x20] sm:$0xf]
        %v342 = vld [vmem:[#allocation5 + $0x24] sm:$0xf]
        %v343 = vld [vmem:[#allocation5 + $0x28] sm:$0xf]
        %v344 = vld [vmem:[#allocation5 + $0x2c] sm:$0xf]
        %v345 = vld [vmem:[#allocation5 + $0x30] sm:$0xf]
        %v346 = vld [vmem:[#allocation5 + $0x34] sm:$0xf]
        %v347 = vld [vmem:[#allocation5 + $0x38] sm:$0xf]
        %v348 = vld [vmem:[#allocation5 + $0x3c] sm:$0xf]
        %v365 = vunpack.c.l.b16 %v333
        %v366 = vunpack.c.l.b16 %v334
        %v367 = vunpack.c.l.b16 %v335
        %v368 = vunpack.c.l.b16 %v336
        %v369 = vunpack.c.l.b16 %v337
        %v370 = vunpack.c.l.b16 %v338
        %v371 = vunpack.c.l.b16 %v339
        %v372 = vunpack.c.l.b16 %v340
        %v373 = vunpack.c.l.b16 %v341
        %v374 = vunpack.c.l.b16 %v342
        %v375 = vunpack.c.l.b16 %v343
        %v376 = vunpack.c.l.b16 %v344
        %v377 = vunpack.c.l.b16 %v345
        %v378 = vunpack.c.l.b16 %v346
        %v379 = vunpack.c.l.b16 %v347
        %v380 = vunpack.c.l.b16 %v348
        %v381 = vpack.c.b16 %v366, %v365
        %v382 = vpack.c.b16 %v368, %v367
        %v383 = vpack.c.b16 %v370, %v369
        %v384 = vpack.c.b16 %v372, %v371
        %v385 = vpack.c.b16 %v374, %v373
        %v386 = vpack.c.b16 %v376, %v375
        %v387 = vpack.c.b16 %v378, %v377
        %v388 = vpack.c.b16 %v380, %v379
        %v399 = vunpack.c.l.b16 %v331
        %v400 = vunpack.c.l.b16 %v332
        %v401 = vpack.c.b16 %v400, %v399
        %403 = vmatprep.subr.bf16.mxu0 0
        %404 = vmatpush1.bf16.xpose.msra.mxu0 %v401
        %405 = vmatprep.subr.bf16.mxu0 0
        %406 = vmatpush1.bf16.xpose.msra.mxu0 0
        %407 = vmatprep.subr.bf16.mxu0 0
        %408 = vmatpush1.bf16.xpose.msra.mxu0 0
        %409 = vmatprep.subr.bf16.mxu0 0
        %410 = vmatpush1.bf16.xpose.msra.mxu0 0
        %411 = vmatprep.subr.bf16.mxu0 0
        %412 = vmatpush1.bf16.xpose.msra.mxu0 0
        %413 = vmatprep.subr.bf16.mxu0 0
        %414 = vmatpush1.bf16.xpose.msra.mxu0 0
        %415 = vmatprep.subr.bf16.mxu0 0
        %416 = vmatpush1.bf16.xpose.msra.mxu0 0
        %417 = vmatprep.subr.bf16.mxu0 0
        %418 = vmatpush1.bf16.xpose.msra.mxu0 0
        %419 = vmatprep.subr.bf16.mxu0 0
        %420 = vmatpush1.bf16.xpose.msra.mxu0 0
        %421 = vmatprep.subr.bf16.mxu0 0
        %422 = vmatpush1.bf16.xpose.msra.mxu0 0
        %423 = vmatprep.subr.bf16.mxu0 0
        %424 = vmatpush1.bf16.xpose.msra.mxu0 0
        %425 = vmatprep.subr.bf16.mxu0 0
        %426 = vmatpush1.bf16.xpose.msra.mxu0 0
        %427 = vmatprep.subr.bf16.mxu0 0
        %428 = vmatpush1.bf16.xpose.msra.mxu0 0
        %429 = vmatprep.subr.bf16.mxu0 0
        %430 = vmatpush1.bf16.xpose.msra.mxu0 0
        %431 = vmatprep.subr.bf16.mxu0 0
        %432 = vmatpush1.bf16.xpose.msra.mxu0 0
        %433 = vmatprep.subr.bf16.mxu0 0
        %434 = vmatpush1.bf16.xpose.msra.mxu0 0
        %435 = vmatprep.mubr.bf16.mxu0 0
        %436 = vmatmul.mubr.bf16.gmra.mrb[0].mxu0 %v381
        %v437 = vpop.f32.mrb[0].mxu0
        %v438 = vadd.f32 0.0, %v437
        %v439 = vpop.f32.mrb[0].mxu0
        %v440 = vpop.f32.mrb[0].mxu0
        %v441 = vadd.f32 0.0, %v440
        %v442 = vpop.f32.mrb[0].mxu0
        %443 = vmatprep.mubr.bf16.mxu0 0
        %444 = vmatmul.mubr.bf16.gmra.mrb[0].mxu0 %v382
        %v445 = vpop.f32.mrb[0].mxu0
        %v446 = vadd.f32 0.0, %v445
        %v447 = vpop.f32.mrb[0].mxu0
        %v448 = vpop.f32.mrb[0].mxu0
        %v449 = vadd.f32 0.0, %v448
        %v450 = vpop.f32.mrb[0].mxu0
        %451 = vmatprep.mubr.bf16.mxu0 0
        %452 = vmatmul.mubr.bf16.gmra.mrb[0].mxu0 %v383
        %v453 = vpop.f32.mrb[0].mxu0
        %v454 = vadd.f32 0.0, %v453
        %v455 = vpop.f32.mrb[0].mxu0
        %v456 = vpop.f32.mrb[0].mxu0
        %v457 = vadd.f32 0.0, %v456
        %v458 = vpop.f32.mrb[0].mxu0
        %459 = vmatprep.mubr.bf16.mxu0 0
        %460 = vmatmul.mubr.bf16.gmra.mrb[0].mxu0 %v384
        %v461 = vpop.f32.mrb[0].mxu0
        %v462 = vadd.f32 0.0, %v461
        %v463 = vpop.f32.mrb[0].mxu0
        %v464 = vpop.f32.mrb[0].mxu0
        %v465 = vadd.f32 0.0, %v464
        %v466 = vpop.f32.mrb[0].mxu0
        %467 = vmatprep.mubr.bf16.mxu0 0
        %468 = vmatmul.mubr.bf16.gmra.mrb[0].mxu0 %v385
        %v469 = vpop.f32.mrb[0].mxu0
        %v470 = vadd.f32 0.0, %v469
        %v471 = vpop.f32.mrb[0].mxu0
        %v472 = vpop.f32.mrb[0].mxu0
        %v473 = vadd.f32 0.0, %v472
        %v474 = vpop.f32.mrb[0].mxu0
        %475 = vmatprep.mubr.bf16.mxu0 0
        %476 = vmatmul.mubr.bf16.gmra.mrb[0].mxu0 %v386
        %v477 = vpop.f32.mrb[0].mxu0
        %v478 = vadd.f32 0.0, %v477
        %v479 = vpop.f32.mrb[0].mxu0
        %v480 = vpop.f32.mrb[0].mxu0
        %v481 = vadd.f32 0.0, %v480
        %v482 = vpop.f32.mrb[0].mxu0
        %483 = vmatprep.mubr.bf16.mxu0 0
        %484 = vmatmul.mubr.bf16.gmra.mrb[0].mxu0 %v387
        %v485 = vpop.f32.mrb[0].mxu0
        %v486 = vadd.f32 0.0, %v485
        %v487 = vpop.f32.mrb[0].mxu0
        %v488 = vpop.f32.mrb[0].mxu0
        %v489 = vadd.f32 0.0, %v488
        %v490 = vpop.f32.mrb[0].mxu0
        %491 = vmatprep.mubr.bf16.mxu0 0
        %492 = vmatmul.mubr.bf16.gmra.mrb[0].mxu0 %v388
        %v493 = vpop.f32.mrb[0].mxu0
        %v494 = vadd.f32 0.0, %v493
        %v495 = vpop.f32.mrb[0].mxu0
        %v496 = vpop.f32.mrb[0].mxu0
        %v497 = vadd.f32 0.0, %v496
        %v498 = vpop.f32.mrb[0].mxu0
        %499 = vdwg.mxu0
        %v500 = vld [vmem:[#allocation7] sm:$0xf]
        %v501 = vld [vmem:[#allocation7 + $0x4] sm:$0xf]
        %v502 = vld [vmem:[#allocation7 + $0x8] sm:$0xf]
        %v503 = vld [vmem:[#allocation7 + $0xc] sm:$0xf]
        %v504 = vld [vmem:[#allocation7 + $0x10] sm:$0xf]
        %v505 = vld [vmem:[#allocation7 + $0x14] sm:$0xf]
        %v506 = vld [vmem:[#allocation7 + $0x18] sm:$0xf]
        %v507 = vld [vmem:[#allocation7 + $0x1c] sm:$0xf]
        %v508 = vld [vmem:[#allocation7 + $0x20] sm:$0xf]
        %v509 = vld [vmem:[#allocation7 + $0x24] sm:$0xf]
        %v510 = vld [vmem:[#allocation7 + $0x28] sm:$0xf]
        %v511 = vld [vmem:[#allocation7 + $0x2c] sm:$0xf]
        %v512 = vld [vmem:[#allocation7 + $0x30] sm:$0xf]
        %v513 = vld [vmem:[#allocation7 + $0x34] sm:$0xf]
        %v514 = vld [vmem:[#allocation7 + $0x38] sm:$0xf]
        %v515 = vld [vmem:[#allocation7 + $0x3c] sm:$0xf]
        %v532 = vunpack.c.l.b16 %v500
        %v533 = vunpack.c.l.b16 %v501
        %v534 = vunpack.c.l.b16 %v502
        %v535 = vunpack.c.l.b16 %v503
        %v536 = vunpack.c.l.b16 %v504
        %v537 = vunpack.c.l.b16 %v505
        %v538 = vunpack.c.l.b16 %v506
        %v539 = vunpack.c.l.b16 %v507
        %v540 = vunpack.c.l.b16 %v508
        %v541 = vunpack.c.l.b16 %v509
        %v542 = vunpack.c.l.b16 %v510
        %v543 = vunpack.c.l.b16 %v511
        %v544 = vunpack.c.l.b16 %v512
        %v545 = vunpack.c.l.b16 %v513
        %v546 = vunpack.c.l.b16 %v514
        %v547 = vunpack.c.l.b16 %v515
        %v548 = vpack.c.b16 %v533, %v532
        %v549 = vpack.c.b16 %v535, %v534
        %v550 = vpack.c.b16 %v537, %v536
        %v551 = vpack.c.b16 %v539, %v538
        %v552 = vpack.c.b16 %v541, %v540
        %v553 = vpack.c.b16 %v543, %v542
        %v554 = vpack.c.b16 %v545, %v544
        %v555 = vpack.c.b16 %v547, %v546
        %564 = vmatprep.subr.bf16.mxu0 0
        %565 = vmatpush1.bf16.xpose.msra.mxu0 %v401
        %566 = vmatprep.subr.bf16.mxu0 0
        %567 = vmatpush1.bf16.xpose.msra.mxu0 0
        %568 = vmatprep.subr.bf16.mxu0 0
        %569 = vmatpush1.bf16.xpose.msra.mxu0 0
        %570 = vmatprep.subr.bf16.mxu0 0
        %571 = vmatpush1.bf16.xpose.msra.mxu0 0
        %572 = vmatprep.subr.bf16.mxu0 0
        %573 = vmatpush1.bf16.xpose.msra.mxu0 0
        %574 = vmatprep.subr.bf16.mxu0 0
        %575 = vmatpush1.bf16.xpose.msra.mxu0 0
        %576 = vmatprep.subr.bf16.mxu0 0
        %577 = vmatpush1.bf16.xpose.msra.mxu0 0
        %578 = vmatprep.subr.bf16.mxu0 0
        %579 = vmatpush1.bf16.xpose.msra.mxu0 0
        %580 = vmatprep.subr.bf16.mxu0 0
        %581 = vmatpush1.bf16.xpose.msra.mxu0 0
        %582 = vmatprep.subr.bf16.mxu0 0
        %583 = vmatpush1.bf16.xpose.msra.mxu0 0
        %584 = vmatprep.subr.bf16.mxu0 0
        %585 = vmatpush1.bf16.xpose.msra.mxu0 0
        %586 = vmatprep.subr.bf16.mxu0 0
        %587 = vmatpush1.bf16.xpose.msra.mxu0 0
        %588 = vmatprep.subr.bf16.mxu0 0
        %589 = vmatpush1.bf16.xpose.msra.mxu0 0
        %590 = vmatprep.subr.bf16.mxu0 0
        %591 = vmatpush1.bf16.xpose.msra.mxu0 0
        %592 = vmatprep.subr.bf16.mxu0 0
        %593 = vmatpush1.bf16.xpose.msra.mxu0 0
        %594 = vmatprep.subr.bf16.mxu0 0
        %595 = vmatpush1.bf16.xpose.msra.mxu0 0
        %596 = vmatprep.mubr.bf16.mxu0 0
        %597 = vmatmul.mubr.bf16.gmra.mrb[0].mxu0 %v548
        %v598 = vpop.f32.mrb[0].mxu0
        %v599 = vadd.f32 0.0, %v598
        %v600 = vpop.f32.mrb[0].mxu0
        %v601 = vpop.f32.mrb[0].mxu0
        %v602 = vadd.f32 0.0, %v601
        %v603 = vpop.f32.mrb[0].mxu0
        %604 = vmatprep.mubr.bf16.mxu0 0
        %605 = vmatmul.mubr.bf16.gmra.mrb[0].mxu0 %v549
        %v606 = vpop.f32.mrb[0].mxu0
        %v607 = vadd.f32 0.0, %v606
        %v608 = vpop.f32.mrb[0].mxu0
        %v609 = vpop.f32.mrb[0].mxu0
        %v610 = vadd.f32 0.0, %v609
        %v611 = vpop.f32.mrb[0].mxu0
        %612 = vmatprep.mubr.bf16.mxu0 0
        %613 = vmatmul.mubr.bf16.gmra.mrb[0].mxu0 %v550
        %v614 = vpop.f32.mrb[0].mxu0
        %v615 = vadd.f32 0.0, %v614
        %v616 = vpop.f32.mrb[0].mxu0
        %v617 = vpop.f32.mrb[0].mxu0
        %v618 = vadd.f32 0.0, %v617
        %v619 = vpop.f32.mrb[0].mxu0
        %620 = vmatprep.mubr.bf16.mxu0 0
        %621 = vmatmul.mubr.bf16.gmra.mrb[0].mxu0 %v551
        %v622 = vpop.f32.mrb[0].mxu0
        %v623 = vadd.f32 0.0, %v622
        %v624 = vpop.f32.mrb[0].mxu0
        %v625 = vpop.f32.mrb[0].mxu0
        %v626 = vadd.f32 0.0, %v625
        %v627 = vpop.f32.mrb[0].mxu0
        %628 = vmatprep.mubr.bf16.mxu0 0
        %629 = vmatmul.mubr.bf16.gmra.mrb[0].mxu0 %v552
        %v630 = vpop.f32.mrb[0].mxu0
        %v631 = vadd.f32 0.0, %v630
        %v632 = vpop.f32.mrb[0].mxu0
        %v633 = vpop.f32.mrb[0].mxu0
        %v634 = vadd.f32 0.0, %v633
        %v635 = vpop.f32.mrb[0].mxu0
        %636 = vmatprep.mubr.bf16.mxu0 0
        %637 = vmatmul.mubr.bf16.gmra.mrb[0].mxu0 %v553
        %v638 = vpop.f32.mrb[0].mxu0
        %v639 = vadd.f32 0.0, %v638
        %v640 = vpop.f32.mrb[0].mxu0
        %v641 = vpop.f32.mrb[0].mxu0
        %v642 = vadd.f32 0.0, %v641
        %v643 = vpop.f32.mrb[0].mxu0
        %644 = vmatprep.mubr.bf16.mxu0 0
        %645 = vmatmul.mubr.bf16.gmra.mrb[0].mxu0 %v554
        %v646 = vpop.f32.mrb[0].mxu0
        %v647 = vadd.f32 0.0, %v646
        %v648 = vpop.f32.mrb[0].mxu0
        %v649 = vpop.f32.mrb[0].mxu0
        %v650 = vadd.f32 0.0, %v649
        %v651 = vpop.f32.mrb[0].mxu0
        %652 = vmatprep.mubr.bf16.mxu0 0
        %653 = vmatmul.mubr.bf16.gmra.mrb[0].mxu0 %v555
        %v654 = vpop.f32.mrb[0].mxu0
        %v655 = vadd.f32 0.0, %v654
        %v656 = vpop.f32.mrb[0].mxu0
        %v657 = vpop.f32.mrb[0].mxu0
        %v658 = vadd.f32 0.0, %v657
        %v659 = vpop.f32.mrb[0].mxu0
        %660 = vdwg.mxu0
        %v661 = vld [vmem:[#allocation8] sm:$0xf]
        %v662 = vld [vmem:[#allocation8 + $0x4] sm:$0xf]
        %v663 = vld [vmem:[#allocation8 + $0x8] sm:$0xf]
        %v664 = vld [vmem:[#allocation8 + $0xc] sm:$0xf]
        %v665 = vld [vmem:[#allocation8 + $0x10] sm:$0xf]
        %v666 = vld [vmem:[#allocation8 + $0x14] sm:$0xf]
        %v667 = vld [vmem:[#allocation8 + $0x18] sm:$0xf]
        %v668 = vld [vmem:[#allocation8 + $0x1c] sm:$0xf]
        %v669 = vld [vmem:[#allocation8 + $0x20] sm:$0xf]
        %v670 = vld [vmem:[#allocation8 + $0x24] sm:$0xf]
        %v671 = vld [vmem:[#allocation8 + $0x28] sm:$0xf]
        %v672 = vld [vmem:[#allocation8 + $0x2c] sm:$0xf]
        %v673 = vld [vmem:[#allocation8 + $0x30] sm:$0xf]
        %v674 = vld [vmem:[#allocation8 + $0x34] sm:$0xf]
        %v675 = vld [vmem:[#allocation8 + $0x38] sm:$0xf]
        %v676 = vld [vmem:[#allocation8 + $0x3c] sm:$0xf]
        %v693 = vunpack.c.l.b16 %v661
        %v694 = vunpack.c.l.b16 %v662
        %v695 = vunpack.c.l.b16 %v663
        %v696 = vunpack.c.l.b16 %v664
        %v697 = vunpack.c.l.b16 %v665
        %v698 = vunpack.c.l.b16 %v666
        %v699 = vunpack.c.l.b16 %v667
        %v700 = vunpack.c.l.b16 %v668
        %v701 = vunpack.c.l.b16 %v669
        %v702 = vunpack.c.l.b16 %v670
        %v703 = vunpack.c.l.b16 %v671
        %v704 = vunpack.c.l.b16 %v672
        %v705 = vunpack.c.l.b16 %v673
        %v706 = vunpack.c.l.b16 %v674
        %v707 = vunpack.c.l.b16 %v675
        %v708 = vunpack.c.l.b16 %v676
        %v709 = vpack.c.b16 %v694, %v693
        %v710 = vpack.c.b16 %v696, %v695
        %v711 = vpack.c.b16 %v698, %v697
        %v712 = vpack.c.b16 %v700, %v699
        %v713 = vpack.c.b16 %v702, %v701
        %v714 = vpack.c.b16 %v704, %v703
        %v715 = vpack.c.b16 %v706, %v705
        %v716 = vpack.c.b16 %v708, %v707
        %725 = vmatprep.subr.bf16.mxu0 0
        %726 = vmatpush1.bf16.xpose.msra.mxu0 %v401
        %727 = vmatprep.subr.bf16.mxu0 0
        %728 = vmatpush1.bf16.xpose.msra.mxu0 0
        %729 = vmatprep.subr.bf16.mxu0 0
        %730 = vmatpush1.bf16.xpose.msra.mxu0 0
        %731 = vmatprep.subr.bf16.mxu0 0
        %732 = vmatpush1.bf16.xpose.msra.mxu0 0
        %733 = vmatprep.subr.bf16.mxu0 0
        %734 = vmatpush1.bf16.xpose.msra.mxu0 0
        %735 = vmatprep.subr.bf16.mxu0 0
        %736 = vmatpush1.bf16.xpose.msra.mxu0 0
        %737 = vmatprep.subr.bf16.mxu0 0
        %738 = vmatpush1.bf16.xpose.msra.mxu0 0
        %739 = vmatprep.subr.bf16.mxu0 0
        %740 = vmatpush1.bf16.xpose.msra.mxu0 0
        %741 = vmatprep.subr.bf16.mxu0 0
        %742 = vmatpush1.bf16.xpose.msra.mxu0 0
        %743 = vmatprep.subr.bf16.mxu0 0
        %744 = vmatpush1.bf16.xpose.msra.mxu0 0
        %745 = vmatprep.subr.bf16.mxu0 0
        %746 = vmatpush1.bf16.xpose.msra.mxu0 0
        %747 = vmatprep.subr.bf16.mxu0 0
        %748 = vmatpush1.bf16.xpose.msra.mxu0 0
        %749 = vmatprep.subr.bf16.mxu0 0
        %750 = vmatpush1.bf16.xpose.msra.mxu0 0
        %751 = vmatprep.subr.bf16.mxu0 0
        %752 = vmatpush1.bf16.xpose.msra.mxu0 0
        %753 = vmatprep.subr.bf16.mxu0 0
        %754 = vmatpush1.bf16.xpose.msra.mxu0 0
        %755 = vmatprep.subr.bf16.mxu0 0
        %756 = vmatpush1.bf16.xpose.msra.mxu0 0
        %757 = vmatprep.mubr.bf16.mxu0 0
        %758 = vmatmul.mubr.bf16.gmra.mrb[0].mxu0 %v709
        %v759 = vpop.f32.mrb[0].mxu0
        %v760 = vadd.f32 0.0, %v759
        %v761 = vpop.f32.mrb[0].mxu0
        %v762 = vpop.f32.mrb[0].mxu0
        %v763 = vadd.f32 0.0, %v762
        %v764 = vpop.f32.mrb[0].mxu0
        %765 = vmatprep.mubr.bf16.mxu0 0
        %766 = vmatmul.mubr.bf16.gmra.mrb[0].mxu0 %v710
        %v767 = vpop.f32.mrb[0].mxu0
        %v768 = vadd.f32 0.0, %v767
        %v769 = vpop.f32.mrb[0].mxu0
        %v770 = vpop.f32.mrb[0].mxu0
        %v771 = vadd.f32 0.0, %v770
        %v772 = vpop.f32.mrb[0].mxu0
        %773 = vmatprep.mubr.bf16.mxu0 0
        %774 = vmatmul.mubr.bf16.gmra.mrb[0].mxu0 %v711
        %v775 = vpop.f32.mrb[0].mxu0
        %v776 = vadd.f32 0.0, %v775
        %v777 = vpop.f32.mrb[0].mxu0
        %v778 = vpop.f32.mrb[0].mxu0
        %v779 = vadd.f32 0.0, %v778
        %v780 = vpop.f32.mrb[0].mxu0
        %781 = vmatprep.mubr.bf16.mxu0 0
        %782 = vmatmul.mubr.bf16.gmra.mrb[0].mxu0 %v712
        %v783 = vpop.f32.mrb[0].mxu0
        %v784 = vadd.f32 0.0, %v783
        %v785 = vpop.f32.mrb[0].mxu0
        %v786 = vpop.f32.mrb[0].mxu0
        %v787 = vadd.f32 0.0, %v786
        %v788 = vpop.f32.mrb[0].mxu0
        %789 = vmatprep.mubr.bf16.mxu0 0
        %790 = vmatmul.mubr.bf16.gmra.mrb[0].mxu0 %v713
        %v791 = vpop.f32.mrb[0].mxu0
        %v792 = vadd.f32 0.0, %v791
        %v793 = vpop.f32.mrb[0].mxu0
        %v794 = vpop.f32.mrb[0].mxu0
        %v795 = vadd.f32 0.0, %v794
        %v796 = vpop.f32.mrb[0].mxu0
        %797 = vmatprep.mubr.bf16.mxu0 0
        %798 = vmatmul.mubr.bf16.gmra.mrb[0].mxu0 %v714
        %v799 = vpop.f32.mrb[0].mxu0
        %v800 = vadd.f32 0.0, %v799
        %v801 = vpop.f32.mrb[0].mxu0
        %v802 = vpop.f32.mrb[0].mxu0
        %v803 = vadd.f32 0.0, %v802
        %v804 = vpop.f32.mrb[0].mxu0
        %805 = vmatprep.mubr.bf16.mxu0 0
        %806 = vmatmul.mubr.bf16.gmra.mrb[0].mxu0 %v715
        %v807 = vpop.f32.mrb[0].mxu0
        %v808 = vadd.f32 0.0, %v807
        %v809 = vpop.f32.mrb[0].mxu0
        %v810 = vpop.f32.mrb[0].mxu0
        %v811 = vadd.f32 0.0, %v810
        %v812 = vpop.f32.mrb[0].mxu0
        %813 = vmatprep.mubr.bf16.mxu0 0
        %814 = vmatmul.mubr.bf16.gmra.mrb[0].mxu0 %v716
        %v815 = vpop.f32.mrb[0].mxu0
        %v816 = vadd.f32 0.0, %v815
        %v817 = vpop.f32.mrb[0].mxu0
        %v818 = vpop.f32.mrb[0].mxu0
        %v819 = vadd.f32 0.0, %v818
        %v820 = vpop.f32.mrb[0].mxu0
        %821 = vdwg.mxu0
        %822 = vxpose.xlu0.b32.start [1/16] %v438, 128
        %823 = vxpose.xlu0.b32.cont [2/16] %v441, 128
        %824 = vxpose.xlu0.b32.cont [3/16] 0.0, 128
        %825 = vxpose.xlu0.b32.cont [4/16] 0.0, 128
        %826 = vxpose.xlu0.b32.cont [5/16] 0.0, 128
        %827 = vxpose.xlu0.b32.cont [6/16] 0.0, 128
        %828 = vxpose.xlu0.b32.cont [7/16] 0.0, 128
        %829 = vxpose.xlu0.b32.cont [8/16] 0.0, 128
        %830 = vxpose.xlu0.b32.cont [9/16] 0.0, 128
        %831 = vxpose.xlu0.b32.cont [10/16] 0.0, 128
        %832 = vxpose.xlu0.b32.cont [11/16] 0.0, 128
        %833 = vxpose.xlu0.b32.cont [12/16] 0.0, 128
        %834 = vxpose.xlu0.b32.cont [13/16] 0.0, 128
        %835 = vxpose.xlu0.b32.cont [14/16] 0.0, 128
        %836 = vxpose.xlu0.b32.cont [15/16] 0.0, 128
        %837 = vxpose.xlu0.b32.end [16/16] 0.0, 128
        %v838 = vpop.trf.xlu0
        %v839 = vpop.trf.xlu0
        %v840 = vpop.trf.xlu0
        %v841 = vpop.trf.xlu0
        %v842 = vpop.trf.xlu0
        %v843 = vpop.trf.xlu0
        %v844 = vpop.trf.xlu0
        %v845 = vpop.trf.xlu0
        %v846 = vpop.trf.xlu0
        %v847 = vpop.trf.xlu0
        %v848 = vpop.trf.xlu0
        %v849 = vpop.trf.xlu0
        %v850 = vpop.trf.xlu0
        %v851 = vpop.trf.xlu0
        %v852 = vpop.trf.xlu0
        %v853 = vpop.trf.xlu0
        %854 = vxpose.xlu0.b32.start [1/16] %v446, 128
        %855 = vxpose.xlu0.b32.cont [2/16] %v449, 128
        %856 = vxpose.xlu0.b32.cont [3/16] 0.0, 128
        %857 = vxpose.xlu0.b32.cont [4/16] 0.0, 128
        %858 = vxpose.xlu0.b32.cont [5/16] 0.0, 128
        %859 = vxpose.xlu0.b32.cont [6/16] 0.0, 128
        %860 = vxpose.xlu0.b32.cont [7/16] 0.0, 128
        %861 = vxpose.xlu0.b32.cont [8/16] 0.0, 128
        %862 = vxpose.xlu0.b32.cont [9/16] 0.0, 128
        %863 = vxpose.xlu0.b32.cont [10/16] 0.0, 128
        %864 = vxpose.xlu0.b32.cont [11/16] 0.0, 128
        %865 = vxpose.xlu0.b32.cont [12/16] 0.0, 128
        %866 = vxpose.xlu0.b32.cont [13/16] 0.0, 128
        %867 = vxpose.xlu0.b32.cont [14/16] 0.0, 128
        %868 = vxpose.xlu0.b32.cont [15/16] 0.0, 128
        %869 = vxpose.xlu0.b32.end [16/16] 0.0, 128
        %v870 = vpop.trf.xlu0
        %v871 = vpop.trf.xlu0
        %v872 = vpop.trf.xlu0
        %v873 = vpop.trf.xlu0
        %v874 = vpop.trf.xlu0
        %v875 = vpop.trf.xlu0
        %v876 = vpop.trf.xlu0
        %v877 = vpop.trf.xlu0
        %v878 = vpop.trf.xlu0
        %v879 = vpop.trf.xlu0
        %v880 = vpop.trf.xlu0
        %v881 = vpop.trf.xlu0
        %v882 = vpop.trf.xlu0
        %v883 = vpop.trf.xlu0
        %v884 = vpop.trf.xlu0
        %v885 = vpop.trf.xlu0
        %886 = vxpose.xlu0.b32.start [1/16] %v454, 128
        %887 = vxpose.xlu0.b32.cont [2/16] %v457, 128
        %888 = vxpose.xlu0.b32.cont [3/16] 0.0, 128
        %889 = vxpose.xlu0.b32.cont [4/16] 0.0, 128
        %890 = vxpose.xlu0.b32.cont [5/16] 0.0, 128
        %891 = vxpose.xlu0.b32.cont [6/16] 0.0, 128
        %892 = vxpose.xlu0.b32.cont [7/16] 0.0, 128
        %893 = vxpose.xlu0.b32.cont [8/16] 0.0, 128
        %894 = vxpose.xlu0.b32.cont [9/16] 0.0, 128
        %895 = vxpose.xlu0.b32.cont [10/16] 0.0, 128
        %896 = vxpose.xlu0.b32.cont [11/16] 0.0, 128
        %897 = vxpose.xlu0.b32.cont [12/16] 0.0, 128
        %898 = vxpose.xlu0.b32.cont [13/16] 0.0, 128
        %899 = vxpose.xlu0.b32.cont [14/16] 0.0, 128
        %900 = vxpose.xlu0.b32.cont [15/16] 0.0, 128
        %901 = vxpose.xlu0.b32.end [16/16] 0.0, 128
        %v902 = vpop.trf.xlu0
        %v903 = vpop.trf.xlu0
        %v904 = vpop.trf.xlu0
        %v905 = vpop.trf.xlu0
        %v906 = vpop.trf.xlu0
        %v907 = vpop.trf.xlu0
        %v908 = vpop.trf.xlu0
        %v909 = vpop.trf.xlu0
        %v910 = vpop.trf.xlu0
        %v911 = vpop.trf.xlu0
        %v912 = vpop.trf.xlu0
        %v913 = vpop.trf.xlu0
        %v914 = vpop.trf.xlu0
        %v915 = vpop.trf.xlu0
        %v916 = vpop.trf.xlu0
        %v917 = vpop.trf.xlu0
        %918 = vxpose.xlu0.b32.start [1/16] %v462, 128
        %919 = vxpose.xlu0.b32.cont [2/16] %v465, 128
        %920 = vxpose.xlu0.b32.cont [3/16] 0.0, 128
        %921 = vxpose.xlu0.b32.cont [4/16] 0.0, 128
        %922 = vxpose.xlu0.b32.cont [5/16] 0.0, 128
        %923 = vxpose.xlu0.b32.cont [6/16] 0.0, 128
        %924 = vxpose.xlu0.b32.cont [7/16] 0.0, 128
        %925 = vxpose.xlu0.b32.cont [8/16] 0.0, 128
        %926 = vxpose.xlu0.b32.cont [9/16] 0.0, 128
        %927 = vxpose.xlu0.b32.cont [10/16] 0.0, 128
        %928 = vxpose.xlu0.b32.cont [11/16] 0.0, 128
        %929 = vxpose.xlu0.b32.cont [12/16] 0.0, 128
        %930 = vxpose.xlu0.b32.cont [13/16] 0.0, 128
        %931 = vxpose.xlu0.b32.cont [14/16] 0.0, 128
        %932 = vxpose.xlu0.b32.cont [15/16] 0.0, 128
        %933 = vxpose.xlu0.b32.end [16/16] 0.0, 128
        %v934 = vpop.trf.xlu0
        %v935 = vpop.trf.xlu0
        %v936 = vpop.trf.xlu0
        %v937 = vpop.trf.xlu0
        %v938 = vpop.trf.xlu0
        %v939 = vpop.trf.xlu0
        %v940 = vpop.trf.xlu0
        %v941 = vpop.trf.xlu0
        %v942 = vpop.trf.xlu0
        %v943 = vpop.trf.xlu0
        %v944 = vpop.trf.xlu0
        %v945 = vpop.trf.xlu0
        %v946 = vpop.trf.xlu0
        %v947 = vpop.trf.xlu0
        %v948 = vpop.trf.xlu0
        %v949 = vpop.trf.xlu0
        %950 = vxpose.xlu0.b32.start [1/16] %v470, 128
        %951 = vxpose.xlu0.b32.cont [2/16] %v473, 128
        %952 = vxpose.xlu0.b32.cont [3/16] 0.0, 128
        %953 = vxpose.xlu0.b32.cont [4/16] 0.0, 128
        %954 = vxpose.xlu0.b32.cont [5/16] 0.0, 128
        %955 = vxpose.xlu0.b32.cont [6/16] 0.0, 128
        %956 = vxpose.xlu0.b32.cont [7/16] 0.0, 128
        %957 = vxpose.xlu0.b32.cont [8/16] 0.0, 128
        %958 = vxpose.xlu0.b32.cont [9/16] 0.0, 128
        %959 = vxpose.xlu0.b32.cont [10/16] 0.0, 128
        %960 = vxpose.xlu0.b32.cont [11/16] 0.0, 128
        %961 = vxpose.xlu0.b32.cont [12/16] 0.0, 128
        %962 = vxpose.xlu0.b32.cont [13/16] 0.0, 128
        %963 = vxpose.xlu0.b32.cont [14/16] 0.0, 128
        %964 = vxpose.xlu0.b32.cont [15/16] 0.0, 128
        %965 = vxpose.xlu0.b32.end [16/16] 0.0, 128
        %v966 = vpop.trf.xlu0
        %v967 = vpop.trf.xlu0
        %v968 = vpop.trf.xlu0
        %v969 = vpop.trf.xlu0
        %v970 = vpop.trf.xlu0
        %v971 = vpop.trf.xlu0
        %v972 = vpop.trf.xlu0
        %v973 = vpop.trf.xlu0
        %v974 = vpop.trf.xlu0
        %v975 = vpop.trf.xlu0
        %v976 = vpop.trf.xlu0
        %v977 = vpop.trf.xlu0
        %v978 = vpop.trf.xlu0
        %v979 = vpop.trf.xlu0
        %v980 = vpop.trf.xlu0
        %v981 = vpop.trf.xlu0
        %982 = vxpose.xlu0.b32.start [1/16] %v478, 128
        %983 = vxpose.xlu0.b32.cont [2/16] %v481, 128
        %984 = vxpose.xlu0.b32.cont [3/16] 0.0, 128
        %985 = vxpose.xlu0.b32.cont [4/16] 0.0, 128
        %986 = vxpose.xlu0.b32.cont [5/16] 0.0, 128
        %987 = vxpose.xlu0.b32.cont [6/16] 0.0, 128
        %988 = vxpose.xlu0.b32.cont [7/16] 0.0, 128
        %989 = vxpose.xlu0.b32.cont [8/16] 0.0, 128
        %990 = vxpose.xlu0.b32.cont [9/16] 0.0, 128
        %991 = vxpose.xlu0.b32.cont [10/16] 0.0, 128
        %992 = vxpose.xlu0.b32.cont [11/16] 0.0, 128
        %993 = vxpose.xlu0.b32.cont [12/16] 0.0, 128
        %994 = vxpose.xlu0.b32.cont [13/16] 0.0, 128
        %995 = vxpose.xlu0.b32.cont [14/16] 0.0, 128
        %996 = vxpose.xlu0.b32.cont [15/16] 0.0, 128
        %997 = vxpose.xlu0.b32.end [16/16] 0.0, 128
        %v998 = vpop.trf.xlu0
        %v999 = vpop.trf.xlu0
        %v1000 = vpop.trf.xlu0
        %v1001 = vpop.trf.xlu0
        %v1002 = vpop.trf.xlu0
        %v1003 = vpop.trf.xlu0
        %v1004 = vpop.trf.xlu0
        %v1005 = vpop.trf.xlu0
        %v1006 = vpop.trf.xlu0
        %v1007 = vpop.trf.xlu0
        %v1008 = vpop.trf.xlu0
        %v1009 = vpop.trf.xlu0
        %v1010 = vpop.trf.xlu0
        %v1011 = vpop.trf.xlu0
        %v1012 = vpop.trf.xlu0
        %v1013 = vpop.trf.xlu0
        %1014 = vxpose.xlu0.b32.start [1/16] %v486, 128
        %1015 = vxpose.xlu0.b32.cont [2/16] %v489, 128
        %1016 = vxpose.xlu0.b32.cont [3/16] 0.0, 128
        %1017 = vxpose.xlu0.b32.cont [4/16] 0.0, 128
        %1018 = vxpose.xlu0.b32.cont [5/16] 0.0, 128
        %1019 = vxpose.xlu0.b32.cont [6/16] 0.0, 128
        %1020 = vxpose.xlu0.b32.cont [7/16] 0.0, 128
        %1021 = vxpose.xlu0.b32.cont [8/16] 0.0, 128
        %1022 = vxpose.xlu0.b32.cont [9/16] 0.0, 128
        %1023 = vxpose.xlu0.b32.cont [10/16] 0.0, 128
        %1024 = vxpose.xlu0.b32.cont [11/16] 0.0, 128
        %1025 = vxpose.xlu0.b32.cont [12/16] 0.0, 128
        %1026 = vxpose.xlu0.b32.cont [13/16] 0.0, 128
        %1027 = vxpose.xlu0.b32.cont [14/16] 0.0, 128
        %1028 = vxpose.xlu0.b32.cont [15/16] 0.0, 128
        %1029 = vxpose.xlu0.b32.end [16/16] 0.0, 128
        %v1030 = vpop.trf.xlu0
        %v1031 = vpop.trf.xlu0
        %v1032 = vpop.trf.xlu0
        %v1033 = vpop.trf.xlu0
        %v1034 = vpop.trf.xlu0
        %v1035 = vpop.trf.xlu0
        %v1036 = vpop.trf.xlu0
        %v1037 = vpop.trf.xlu0
        %v1038 = vpop.trf.xlu0
        %v1039 = vpop.trf.xlu0
        %v1040 = vpop.trf.xlu0
        %v1041 = vpop.trf.xlu0
        %v1042 = vpop.trf.xlu0
        %v1043 = vpop.trf.xlu0
        %v1044 = vpop.trf.xlu0
        %v1045 = vpop.trf.xlu0
        %1046 = vxpose.xlu0.b32.start [1/16] %v494, 128
        %1047 = vxpose.xlu0.b32.cont [2/16] %v497, 128
        %1048 = vxpose.xlu0.b32.cont [3/16] 0.0, 128
        %1049 = vxpose.xlu0.b32.cont [4/16] 0.0, 128
        %1050 = vxpose.xlu0.b32.cont [5/16] 0.0, 128
        %1051 = vxpose.xlu0.b32.cont [6/16] 0.0, 128
        %1052 = vxpose.xlu0.b32.cont [7/16] 0.0, 128
        %1053 = vxpose.xlu0.b32.cont [8/16] 0.0, 128
        %1054 = vxpose.xlu0.b32.cont [9/16] 0.0, 128
        %1055 = vxpose.xlu0.b32.cont [10/16] 0.0, 128
        %1056 = vxpose.xlu0.b32.cont [11/16] 0.0, 128
        %1057 = vxpose.xlu0.b32.cont [12/16] 0.0, 128
        %1058 = vxpose.xlu0.b32.cont [13/16] 0.0, 128
        %1059 = vxpose.xlu0.b32.cont [14/16] 0.0, 128
        %1060 = vxpose.xlu0.b32.cont [15/16] 0.0, 128
        %1061 = vxpose.xlu0.b32.end [16/16] 0.0, 128
        %v1062 = vpop.trf.xlu0
        %v1063 = vpop.trf.xlu0
        %v1064 = vpop.trf.xlu0
        %v1065 = vpop.trf.xlu0
        %v1066 = vpop.trf.xlu0
        %v1067 = vpop.trf.xlu0
        %v1068 = vpop.trf.xlu0
        %v1069 = vpop.trf.xlu0
        %v1070 = vpop.trf.xlu0
        %v1071 = vpop.trf.xlu0
        %v1072 = vpop.trf.xlu0
        %v1073 = vpop.trf.xlu0
        %v1074 = vpop.trf.xlu0
        %v1075 = vpop.trf.xlu0
        %v1076 = vpop.trf.xlu0
        %v1077 = vpop.trf.xlu0
        %v1078 = vpack.c.bf16 %v839, %v838
        %v1079 = vpack.c.bf16 %v871, %v870
        %v1080 = vpack.c.bf16 %v903, %v902
        %v1081 = vpack.c.bf16 %v935, %v934
        %v1082 = vpack.c.bf16 %v967, %v966
        %v1083 = vpack.c.bf16 %v999, %v998
        %v1084 = vpack.c.bf16 %v1031, %v1030
        %v1085 = vpack.c.bf16 %v1063, %v1062
        %v1086 = vpack.c.bf16 %v602, %v599
        %v1087 = vpack.c.bf16 %v610, %v607
        %v1088 = vpack.c.bf16 %v618, %v615
        %v1089 = vpack.c.bf16 %v626, %v623
        %v1090 = vpack.c.bf16 %v634, %v631
        %v1091 = vpack.c.bf16 %v642, %v639
        %v1092 = vpack.c.bf16 %v650, %v647
        %v1093 = vpack.c.bf16 %v658, %v655
        %vm1094 = vcmask 130048
        %v1096 = vsel %vm1094, %v1078, 0
        %1098 = vmatprep.subr.bf16.mxu0 0
        %1099 = vmatpush1.bf16.msra.mxu0 %v1086
        %1100 = vmatprep.subr.bf16.mxu0 0
        %1101 = vmatpush1.bf16.msra.mxu0 0
        %1102 = vmatprep.subr.bf16.mxu0 0
        %1103 = vmatpush1.bf16.msra.mxu0 0
        %1104 = vmatprep.subr.bf16.mxu0 0
        %1105 = vmatpush1.bf16.msra.mxu0 0
        %1106 = vmatprep.subr.bf16.mxu0 0
        %1107 = vmatpush1.bf16.msra.mxu0 0
        %1108 = vmatprep.subr.bf16.mxu0 0
        %1109 = vmatpush1.bf16.msra.mxu0 0
        %1110 = vmatprep.subr.bf16.mxu0 0
        %1111 = vmatpush1.bf16.msra.mxu0 0
        %1112 = vmatprep.subr.bf16.mxu0 0
        %1113 = vmatpush1.bf16.msra.mxu0 0
        %1114 = vmatprep.subr.bf16.mxu0 0
        %1115 = vmatpush1.bf16.msra.mxu0 0
        %1116 = vmatprep.subr.bf16.mxu0 0
        %1117 = vmatpush1.bf16.msra.mxu0 0
        %1118 = vmatprep.subr.bf16.mxu0 0
        %1119 = vmatpush1.bf16.msra.mxu0 0
        %1120 = vmatprep.subr.bf16.mxu0 0
        %1121 = vmatpush1.bf16.msra.mxu0 0
        %1122 = vmatprep.subr.bf16.mxu0 0
        %1123 = vmatpush1.bf16.msra.mxu0 0
        %1124 = vmatprep.subr.bf16.mxu0 0
        %1125 = vmatpush1.bf16.msra.mxu0 0
        %1126 = vmatprep.subr.bf16.mxu0 0
        %1127 = vmatpush1.bf16.msra.mxu0 0
        %1128 = vmatprep.subr.bf16.mxu0 0
        %1129 = vmatpush1.bf16.msra.mxu0 0
        %1130 = vmatprep.mubr.bf16.mxu0 0
        %1131 = vmatmul.mubr.bf16.gmra.mrb[0].mxu0 %v1096
        %v1132 = vpop.f32.mrb[0].mxu0
        %v1133 = vadd.f32 0.0, %v1132
        %v1134 = vpop.f32.mrb[0].mxu0
        %v1135 = vpop.f32.mrb[0].mxu0
        %v1136 = vadd.f32 0.0, %v1135
        %v1137 = vpop.f32.mrb[0].mxu0
        %1138 = vdwg.mxu0
        %v1140 = vsel %vm1094, %v1079, 0
        %1142 = vmatprep.subr.bf16.mxu0 0
        %1143 = vmatpush1.bf16.msra.mxu0 %v1087
        %1144 = vmatprep.subr.bf16.mxu0 0
        %1145 = vmatpush1.bf16.msra.mxu0 0
        %1146 = vmatprep.subr.bf16.mxu0 0
        %1147 = vmatpush1.bf16.msra.mxu0 0
        %1148 = vmatprep.subr.bf16.mxu0 0
        %1149 = vmatpush1.bf16.msra.mxu0 0
        %1150 = vmatprep.subr.bf16.mxu0 0
        %1151 = vmatpush1.bf16.msra.mxu0 0
        %1152 = vmatprep.subr.bf16.mxu0 0
        %1153 = vmatpush1.bf16.msra.mxu0 0
        %1154 = vmatprep.subr.bf16.mxu0 0
        %1155 = vmatpush1.bf16.msra.mxu0 0
        %1156 = vmatprep.subr.bf16.mxu0 0
        %1157 = vmatpush1.bf16.msra.mxu0 0
        %1158 = vmatprep.subr.bf16.mxu0 0
        %1159 = vmatpush1.bf16.msra.mxu0 0
        %1160 = vmatprep.subr.bf16.mxu0 0
        %1161 = vmatpush1.bf16.msra.mxu0 0
        %1162 = vmatprep.subr.bf16.mxu0 0
        %1163 = vmatpush1.bf16.msra.mxu0 0
        %1164 = vmatprep.subr.bf16.mxu0 0
        %1165 = vmatpush1.bf16.msra.mxu0 0
        %1166 = vmatprep.subr.bf16.mxu0 0
        %1167 = vmatpush1.bf16.msra.mxu0 0
        %1168 = vmatprep.subr.bf16.mxu0 0
        %1169 = vmatpush1.bf16.msra.mxu0 0
        %1170 = vmatprep.subr.bf16.mxu0 0
        %1171 = vmatpush1.bf16.msra.mxu0 0
        %1172 = vmatprep.subr.bf16.mxu0 0
        %1173 = vmatpush1.bf16.msra.mxu0 0
        %1174 = vmatprep.mubr.bf16.mxu0 0
        %1175 = vmatmul.mubr.bf16.gmra.mrb[0].mxu0 %v1140
        %v1176 = vpop.f32.mrb[0].mxu0
        %v1177 = vadd.f32 0.0, %v1176
        %v1178 = vpop.f32.mrb[0].mxu0
        %v1179 = vpop.f32.mrb[0].mxu0
        %v1180 = vadd.f32 0.0, %v1179
        %v1181 = vpop.f32.mrb[0].mxu0
        %1182 = vdwg.mxu0
        %v1184 = vsel %vm1094, %v1080, 0
        %1186 = vmatprep.subr.bf16.mxu0 0
        %1187 = vmatpush1.bf16.msra.mxu0 %v1088
        %1188 = vmatprep.subr.bf16.mxu0 0
        %1189 = vmatpush1.bf16.msra.mxu0 0
        %1190 = vmatprep.subr.bf16.mxu0 0
        %1191 = vmatpush1.bf16.msra.mxu0 0
        %1192 = vmatprep.subr.bf16.mxu0 0
        %1193 = vmatpush1.bf16.msra.mxu0 0
        %1194 = vmatprep.subr.bf16.mxu0 0
        %1195 = vmatpush1.bf16.msra.mxu0 0
        %1196 = vmatprep.subr.bf16.mxu0 0
        %1197 = vmatpush1.bf16.msra.mxu0 0
        %1198 = vmatprep.subr.bf16.mxu0 0
        %1199 = vmatpush1.bf16.msra.mxu0 0
        %1200 = vmatprep.subr.bf16.mxu0 0
        %1201 = vmatpush1.bf16.msra.mxu0 0
        %1202 = vmatprep.subr.bf16.mxu0 0
        %1203 = vmatpush1.bf16.msra.mxu0 0
        %1204 = vmatprep.subr.bf16.mxu0 0
        %1205 = vmatpush1.bf16.msra.mxu0 0
        %1206 = vmatprep.subr.bf16.mxu0 0
        %1207 = vmatpush1.bf16.msra.mxu0 0
        %1208 = vmatprep.subr.bf16.mxu0 0
        %1209 = vmatpush1.bf16.msra.mxu0 0
        %1210 = vmatprep.subr.bf16.mxu0 0
        %1211 = vmatpush1.bf16.msra.mxu0 0
        %1212 = vmatprep.subr.bf16.mxu0 0
        %1213 = vmatpush1.bf16.msra.mxu0 0
        %1214 = vmatprep.subr.bf16.mxu0 0
        %1215 = vmatpush1.bf16.msra.mxu0 0
        %1216 = vmatprep.subr.bf16.mxu0 0
        %1217 = vmatpush1.bf16.msra.mxu0 0
        %1218 = vmatprep.mubr.bf16.mxu0 0
        %1219 = vmatmul.mubr.bf16.gmra.mrb[0].mxu0 %v1184
        %v1220 = vpop.f32.mrb[0].mxu0
        %v1221 = vadd.f32 0.0, %v1220
        %v1222 = vpop.f32.mrb[0].mxu0
        %v1223 = vpop.f32.mrb[0].mxu0
        %v1224 = vadd.f32 0.0, %v1223
        %v1225 = vpop.f32.mrb[0].mxu0
        %1226 = vdwg.mxu0
        %v1228 = vsel %vm1094, %v1081, 0
        %1230 = vmatprep.subr.bf16.mxu0 0
        %1231 = vmatpush1.bf16.msra.mxu0 %v1089
        %1232 = vmatprep.subr.bf16.mxu0 0
        %1233 = vmatpush1.bf16.msra.mxu0 0
        %1234 = vmatprep.subr.bf16.mxu0 0
        %1235 = vmatpush1.bf16.msra.mxu0 0
        %1236 = vmatprep.subr.bf16.mxu0 0
        %1237 = vmatpush1.bf16.msra.mxu0 0
        %1238 = vmatprep.subr.bf16.mxu0 0
        %1239 = vmatpush1.bf16.msra.mxu0 0
        %1240 = vmatprep.subr.bf16.mxu0 0
        %1241 = vmatpush1.bf16.msra.mxu0 0
        %1242 = vmatprep.subr.bf16.mxu0 0
        %1243 = vmatpush1.bf16.msra.mxu0 0
        %1244 = vmatprep.subr.bf16.mxu0 0
        %1245 = vmatpush1.bf16.msra.mxu0 0
        %1246 = vmatprep.subr.bf16.mxu0 0
        %1247 = vmatpush1.bf16.msra.mxu0 0
        %1248 = vmatprep.subr.bf16.mxu0 0
        %1249 = vmatpush1.bf16.msra.mxu0 0
        %1250 = vmatprep.subr.bf16.mxu0 0
        %1251 = vmatpush1.bf16.msra.mxu0 0
        %1252 = vmatprep.subr.bf16.mxu0 0
        %1253 = vmatpush1.bf16.msra.mxu0 0
        %1254 = vmatprep.subr.bf16.mxu0 0
        %1255 = vmatpush1.bf16.msra.mxu0 0
        %1256 = vmatprep.subr.bf16.mxu0 0
        %1257 = vmatpush1.bf16.msra.mxu0 0
        %1258 = vmatprep.subr.bf16.mxu0 0
        %1259 = vmatpush1.bf16.msra.mxu0 0
        %1260 = vmatprep.subr.bf16.mxu0 0
        %1261 = vmatpush1.bf16.msra.mxu0 0
        %1262 = vmatprep.mubr.bf16.mxu0 0
        %1263 = vmatmul.mubr.bf16.gmra.mrb[0].mxu0 %v1228
        %v1264 = vpop.f32.mrb[0].mxu0
        %v1265 = vadd.f32 0.0, %v1264
        %v1266 = vpop.f32.mrb[0].mxu0
        %v1267 = vpop.f32.mrb[0].mxu0
        %v1268 = vadd.f32 0.0, %v1267
        %v1269 = vpop.f32.mrb[0].mxu0
        %1270 = vdwg.mxu0
        %v1272 = vsel %vm1094, %v1082, 0
        %1274 = vmatprep.subr.bf16.mxu0 0
        %1275 = vmatpush1.bf16.msra.mxu0 %v1090
        %1276 = vmatprep.subr.bf16.mxu0 0
        %1277 = vmatpush1.bf16.msra.mxu0 0
        %1278 = vmatprep.subr.bf16.mxu0 0
        %1279 = vmatpush1.bf16.msra.mxu0 0
        %1280 = vmatprep.subr.bf16.mxu0 0
        %1281 = vmatpush1.bf16.msra.mxu0 0
        %1282 = vmatprep.subr.bf16.mxu0 0
        %1283 = vmatpush1.bf16.msra.mxu0 0
        %1284 = vmatprep.subr.bf16.mxu0 0
        %1285 = vmatpush1.bf16.msra.mxu0 0
        %1286 = vmatprep.subr.bf16.mxu0 0
        %1287 = vmatpush1.bf16.msra.mxu0 0
        %1288 = vmatprep.subr.bf16.mxu0 0
        %1289 = vmatpush1.bf16.msra.mxu0 0
        %1290 = vmatprep.subr.bf16.mxu0 0
        %1291 = vmatpush1.bf16.msra.mxu0 0
        %1292 = vmatprep.subr.bf16.mxu0 0
        %1293 = vmatpush1.bf16.msra.mxu0 0
        %1294 = vmatprep.subr.bf16.mxu0 0
        %1295 = vmatpush1.bf16.msra.mxu0 0
        %1296 = vmatprep.subr.bf16.mxu0 0
        %1297 = vmatpush1.bf16.msra.mxu0 0
        %1298 = vmatprep.subr.bf16.mxu0 0
        %1299 = vmatpush1.bf16.msra.mxu0 0
        %1300 = vmatprep.subr.bf16.mxu0 0
        %1301 = vmatpush1.bf16.msra.mxu0 0
        %1302 = vmatprep.subr.bf16.mxu0 0
        %1303 = vmatpush1.bf16.msra.mxu0 0
        %1304 = vmatprep.subr.bf16.mxu0 0
        %1305 = vmatpush1.bf16.msra.mxu0 0
        %1306 = vmatprep.mubr.bf16.mxu0 0
        %1307 = vmatmul.mubr.bf16.gmra.mrb[0].mxu0 %v1272
        %v1308 = vpop.f32.mrb[0].mxu0
        %v1309 = vadd.f32 0.0, %v1308
        %v1310 = vpop.f32.mrb[0].mxu0
        %v1311 = vpop.f32.mrb[0].mxu0
        %v1312 = vadd.f32 0.0, %v1311
        %v1313 = vpop.f32.mrb[0].mxu0
        %1314 = vdwg.mxu0
        %v1316 = vsel %vm1094, %v1083, 0
        %1318 = vmatprep.subr.bf16.mxu0 0
        %1319 = vmatpush1.bf16.msra.mxu0 %v1091
        %1320 = vmatprep.subr.bf16.mxu0 0
        %1321 = vmatpush1.bf16.msra.mxu0 0
        %1322 = vmatprep.subr.bf16.mxu0 0
        %1323 = vmatpush1.bf16.msra.mxu0 0
        %1324 = vmatprep.subr.bf16.mxu0 0
        %1325 = vmatpush1.bf16.msra.mxu0 0
        %1326 = vmatprep.subr.bf16.mxu0 0
        %1327 = vmatpush1.bf16.msra.mxu0 0
        %1328 = vmatprep.subr.bf16.mxu0 0
        %1329 = vmatpush1.bf16.msra.mxu0 0
        %1330 = vmatprep.subr.bf16.mxu0 0
        %1331 = vmatpush1.bf16.msra.mxu0 0
        %1332 = vmatprep.subr.bf16.mxu0 0
        %1333 = vmatpush1.bf16.msra.mxu0 0
        %1334 = vmatprep.subr.bf16.mxu0 0
        %1335 = vmatpush1.bf16.msra.mxu0 0
        %1336 = vmatprep.subr.bf16.mxu0 0
        %1337 = vmatpush1.bf16.msra.mxu0 0
        %1338 = vmatprep.subr.bf16.mxu0 0
        %1339 = vmatpush1.bf16.msra.mxu0 0
        %1340 = vmatprep.subr.bf16.mxu0 0
        %1341 = vmatpush1.bf16.msra.mxu0 0
        %1342 = vmatprep.subr.bf16.mxu0 0
        %1343 = vmatpush1.bf16.msra.mxu0 0
        %1344 = vmatprep.subr.bf16.mxu0 0
        %1345 = vmatpush1.bf16.msra.mxu0 0
        %1346 = vmatprep.subr.bf16.mxu0 0
        %1347 = vmatpush1.bf16.msra.mxu0 0
        %1348 = vmatprep.subr.bf16.mxu0 0
        %1349 = vmatpush1.bf16.msra.mxu0 0
        %1350 = vmatprep.mubr.bf16.mxu0 0
        %1351 = vmatmul.mubr.bf16.gmra.mrb[0].mxu0 %v1316
        %v1352 = vpop.f32.mrb[0].mxu0
        %v1353 = vadd.f32 0.0, %v1352
        %v1354 = vpop.f32.mrb[0].mxu0
        %v1355 = vpop.f32.mrb[0].mxu0
        %v1356 = vadd.f32 0.0, %v1355
        %v1357 = vpop.f32.mrb[0].mxu0
        %1358 = vdwg.mxu0
        %v1360 = vsel %vm1094, %v1084, 0
        %1362 = vmatprep.subr.bf16.mxu0 0
        %1363 = vmatpush1.bf16.msra.mxu0 %v1092
        %1364 = vmatprep.subr.bf16.mxu0 0
        %1365 = vmatpush1.bf16.msra.mxu0 0
        %1366 = vmatprep.subr.bf16.mxu0 0
        %1367 = vmatpush1.bf16.msra.mxu0 0
        %1368 = vmatprep.subr.bf16.mxu0 0
        %1369 = vmatpush1.bf16.msra.mxu0 0
        %1370 = vmatprep.subr.bf16.mxu0 0
        %1371 = vmatpush1.bf16.msra.mxu0 0
        %1372 = vmatprep.subr.bf16.mxu0 0
        %1373 = vmatpush1.bf16.msra.mxu0 0
        %1374 = vmatprep.subr.bf16.mxu0 0
        %1375 = vmatpush1.bf16.msra.mxu0 0
        %1376 = vmatprep.subr.bf16.mxu0 0
        %1377 = vmatpush1.bf16.msra.mxu0 0
        %1378 = vmatprep.subr.bf16.mxu0 0
        %1379 = vmatpush1.bf16.msra.mxu0 0
        %1380 = vmatprep.subr.bf16.mxu0 0
        %1381 = vmatpush1.bf16.msra.mxu0 0
        %1382 = vmatprep.subr.bf16.mxu0 0
        %1383 = vmatpush1.bf16.msra.mxu0 0
        %1384 = vmatprep.subr.bf16.mxu0 0
        %1385 = vmatpush1.bf16.msra.mxu0 0
        %1386 = vmatprep.subr.bf16.mxu0 0
        %1387 = vmatpush1.bf16.msra.mxu0 0
        %1388 = vmatprep.subr.bf16.mxu0 0
        %1389 = vmatpush1.bf16.msra.mxu0 0
        %1390 = vmatprep.subr.bf16.mxu0 0
        %1391 = vmatpush1.bf16.msra.mxu0 0
        %1392 = vmatprep.subr.bf16.mxu0 0
        %1393 = vmatpush1.bf16.msra.mxu0 0
        %1394 = vmatprep.mubr.bf16.mxu0 0
        %1395 = vmatmul.mubr.bf16.gmra.mrb[0].mxu0 %v1360
        %v1396 = vpop.f32.mrb[0].mxu0
        %v1397 = vadd.f32 0.0, %v1396
        %v1398 = vpop.f32.mrb[0].mxu0
        %v1399 = vpop.f32.mrb[0].mxu0
        %v1400 = vadd.f32 0.0, %v1399
        %v1401 = vpop.f32.mrb[0].mxu0
        %1402 = vdwg.mxu0
        %v1404 = vsel %vm1094, %v1085, 0
        %1406 = vmatprep.subr.bf16.mxu0 0
        %1407 = vmatpush1.bf16.msra.mxu0 %v1093
        %1408 = vmatprep.subr.bf16.mxu0 0
        %1409 = vmatpush1.bf16.msra.mxu0 0
        %1410 = vmatprep.subr.bf16.mxu0 0
        %1411 = vmatpush1.bf16.msra.mxu0 0
        %1412 = vmatprep.subr.bf16.mxu0 0
        %1413 = vmatpush1.bf16.msra.mxu0 0
        %1414 = vmatprep.subr.bf16.mxu0 0
        %1415 = vmatpush1.bf16.msra.mxu0 0
        %1416 = vmatprep.subr.bf16.mxu0 0
        %1417 = vmatpush1.bf16.msra.mxu0 0
        %1418 = vmatprep.subr.bf16.mxu0 0
        %1419 = vmatpush1.bf16.msra.mxu0 0
        %1420 = vmatprep.subr.bf16.mxu0 0
        %1421 = vmatpush1.bf16.msra.mxu0 0
        %1422 = vmatprep.subr.bf16.mxu0 0
        %1423 = vmatpush1.bf16.msra.mxu0 0
        %1424 = vmatprep.subr.bf16.mxu0 0
        %1425 = vmatpush1.bf16.msra.mxu0 0
        %1426 = vmatprep.subr.bf16.mxu0 0
        %1427 = vmatpush1.bf16.msra.mxu0 0
        %1428 = vmatprep.subr.bf16.mxu0 0
        %1429 = vmatpush1.bf16.msra.mxu0 0
        %1430 = vmatprep.subr.bf16.mxu0 0
        %1431 = vmatpush1.bf16.msra.mxu0 0
        %1432 = vmatprep.subr.bf16.mxu0 0
        %1433 = vmatpush1.bf16.msra.mxu0 0
        %1434 = vmatprep.subr.bf16.mxu0 0
        %1435 = vmatpush1.bf16.msra.mxu0 0
        %1436 = vmatprep.subr.bf16.mxu0 0
        %1437 = vmatpush1.bf16.msra.mxu0 0
        %1438 = vmatprep.mubr.bf16.mxu0 0
        %1439 = vmatmul.mubr.bf16.gmra.mrb[0].mxu0 %v1404
        %v1440 = vpop.f32.mrb[0].mxu0
        %v1441 = vadd.f32 0.0, %v1440
        %v1442 = vpop.f32.mrb[0].mxu0
        %v1443 = vpop.f32.mrb[0].mxu0
        %v1444 = vadd.f32 0.0, %v1443
        %v1445 = vpop.f32.mrb[0].mxu0
        %1446 = vdwg.mxu0
        %v1447 = vlaneseq
        %v1448 = vand.u32 %v1447, 127
        %vm1449 = vcmp.lt.s32.totalorder %v1448, 12
        %v1450 = vsel %vm1449, %v1133, -1e+30
        %v1451 = vsel %vm1449, %v1136, -1e+30
        %v1452 = vsel %vm1449, %v1177, -1e+30
        %v1453 = vsel %vm1449, %v1180, -1e+30
        %v1454 = vsel %vm1449, %v1221, -1e+30
        %v1455 = vsel %vm1449, %v1224, -1e+30
        %v1456 = vsel %vm1449, %v1265, -1e+30
        %v1457 = vsel %vm1449, %v1268, -1e+30
        %v1458 = vsel %vm1449, %v1309, -1e+30
        %v1459 = vsel %vm1449, %v1312, -1e+30
        %v1460 = vsel %vm1449, %v1353, -1e+30
        %v1461 = vsel %vm1449, %v1356, -1e+30
        %v1462 = vsel %vm1449, %v1397, -1e+30
        %v1463 = vsel %vm1449, %v1400, -1e+30
        %v1464 = vsel %vm1449, %v1441, -1e+30
        %v1465 = vsel %vm1449, %v1444, -1e+30
        %v1466 = vsel %vm1094, %v1450, -inf
        %1467 = vmax.xlane.f32.xlu0 %v1466
        %v1468 = vpop.xlane.xlu0 %1467
        %v1469 = vsel %vm1094, %v1451, -inf
        %1470 = vmax.xlane.f32.xlu0 %v1469
        %v1471 = vpop.xlane.xlu0 %1470
        %v1472 = vsel %vm1094, %v1452, -inf
        %1473 = vmax.xlane.f32.xlu0 %v1472
        %v1474 = vpop.xlane.xlu0 %1473
        %v1475 = vsel %vm1094, %v1453, -inf
        %1476 = vmax.xlane.f32.xlu0 %v1475
        %v1477 = vpop.xlane.xlu0 %1476
        %v1478 = vsel %vm1094, %v1454, -inf
        %1479 = vmax.xlane.f32.xlu0 %v1478
        %v1480 = vpop.xlane.xlu0 %1479
        %v1481 = vsel %vm1094, %v1455, -inf
        %1482 = vmax.xlane.f32.xlu0 %v1481
        %v1483 = vpop.xlane.xlu0 %1482
        %v1484 = vsel %vm1094, %v1456, -inf
        %1485 = vmax.xlane.f32.xlu0 %v1484
        %v1486 = vpop.xlane.xlu0 %1485
        %v1487 = vsel %vm1094, %v1457, -inf
        %1488 = vmax.xlane.f32.xlu0 %v1487
        %v1489 = vpop.xlane.xlu0 %1488
        %v1490 = vsel %vm1094, %v1458, -inf
        %1491 = vmax.xlane.f32.xlu0 %v1490
        %v1492 = vpop.xlane.xlu0 %1491
        %v1493 = vsel %vm1094, %v1459, -inf
        %1494 = vmax.xlane.f32.xlu0 %v1493
        %v1495 = vpop.xlane.xlu0 %1494
        %v1496 = vsel %vm1094, %v1460, -inf
        %1497 = vmax.xlane.f32.xlu0 %v1496
        %v1498 = vpop.xlane.xlu0 %1497
        %v1499 = vsel %vm1094, %v1461, -inf
        %1500 = vmax.xlane.f32.xlu0 %v1499
        %v1501 = vpop.xlane.xlu0 %1500
        %v1502 = vsel %vm1094, %v1462, -inf
        %1503 = vmax.xlane.f32.xlu0 %v1502
        %v1504 = vpop.xlane.xlu0 %1503
        %v1505 = vsel %vm1094, %v1463, -inf
        %1506 = vmax.xlane.f32.xlu0 %v1505
        %v1507 = vpop.xlane.xlu0 %1506
        %v1508 = vsel %vm1094, %v1464, -inf
        %1509 = vmax.xlane.f32.xlu0 %v1508
        %v1510 = vpop.xlane.xlu0 %1509
        %v1511 = vsel %vm1094, %v1465, -inf
        %1512 = vmax.xlane.f32.xlu0 %v1511
        %v1513 = vpop.xlane.xlu0 %1512
        %v1514 = vsub.f32 %v1450, %v1468
        %v1515 = vsub.f32 %v1451, %v1471
        %v1516 = vsub.f32 %v1452, %v1474
        %v1517 = vsub.f32 %v1453, %v1477
        %v1518 = vsub.f32 %v1454, %v1480
        %v1519 = vsub.f32 %v1455, %v1483
        %v1520 = vsub.f32 %v1456, %v1486
        %v1521 = vsub.f32 %v1457, %v1489
        %v1522 = vsub.f32 %v1458, %v1492
        %v1523 = vsub.f32 %v1459, %v1495
        %v1524 = vsub.f32 %v1460, %v1498
        %v1525 = vsub.f32 %v1461, %v1501
        %v1526 = vsub.f32 %v1462, %v1504
        %v1527 = vsub.f32 %v1463, %v1507
        %v1528 = vsub.f32 %v1464, %v1510
        %v1529 = vsub.f32 %v1465, %v1513
        %v1530 = vmul.f32 %v1514, 1.442695
        %v1531 = vpow.pop %v1530
        %v1532 = vmul.f32 %v1515, 1.442695
        %v1533 = vpow.pop %v1532
        %v1534 = vmul.f32 %v1516, 1.442695
        %v1535 = vpow.pop %v1534
        %v1536 = vmul.f32 %v1517, 1.442695
        %v1537 = vpow.pop %v1536
        %v1538 = vmul.f32 %v1518, 1.442695
        %v1539 = vpow.pop %v1538
        %v1540 = vmul.f32 %v1519, 1.442695
        %v1541 = vpow.pop %v1540
        %v1542 = vmul.f32 %v1520, 1.442695
        %v1543 = vpow.pop %v1542
        %v1544 = vmul.f32 %v1521, 1.442695
        %v1545 = vpow.pop %v1544
        %v1546 = vmul.f32 %v1522, 1.442695
        %v1547 = vpow.pop %v1546
        %v1548 = vmul.f32 %v1523, 1.442695
        %v1549 = vpow.pop %v1548
        %v1550 = vmul.f32 %v1524, 1.442695
        %v1551 = vpow.pop %v1550
        %v1552 = vmul.f32 %v1525, 1.442695
        %v1553 = vpow.pop %v1552
        %v1554 = vmul.f32 %v1526, 1.442695
        %v1555 = vpow.pop %v1554
        %v1556 = vmul.f32 %v1527, 1.442695
        %v1557 = vpow.pop %v1556
        %v1558 = vmul.f32 %v1528, 1.442695
        %v1559 = vpow.pop %v1558
        %v1560 = vmul.f32 %v1529, 1.442695
        %v1561 = vpow.pop %v1560
        %v1562 = vsel %vm1094, %v1531, 0.0
        %1563 = vadd.xlane.f32.xlu0 %v1562
        %v1564 = vpop.xlane.xlu0 %1563
        %v1565 = vsel %vm1094, %v1533, 0.0
        %1566 = vadd.xlane.f32.xlu0 %v1565
        %v1567 = vpop.xlane.xlu0 %1566
        %v1568 = vsel %vm1094, %v1535, 0.0
        %1569 = vadd.xlane.f32.xlu0 %v1568
        %v1570 = vpop.xlane.xlu0 %1569
        %v1571 = vsel %vm1094, %v1537, 0.0
        %1572 = vadd.xlane.f32.xlu0 %v1571
        %v1573 = vpop.xlane.xlu0 %1572
        %v1574 = vsel %vm1094, %v1539, 0.0
        %1575 = vadd.xlane.f32.xlu0 %v1574
        %v1576 = vpop.xlane.xlu0 %1575
        %v1577 = vsel %vm1094, %v1541, 0.0
        %1578 = vadd.xlane.f32.xlu0 %v1577
        %v1579 = vpop.xlane.xlu0 %1578
        %v1580 = vsel %vm1094, %v1543, 0.0
        %1581 = vadd.xlane.f32.xlu0 %v1580
        %v1582 = vpop.xlane.xlu0 %1581
        %v1583 = vsel %vm1094, %v1545, 0.0
        %1584 = vadd.xlane.f32.xlu0 %v1583
        %v1585 = vpop.xlane.xlu0 %1584
        %v1586 = vsel %vm1094, %v1547, 0.0
        %1587 = vadd.xlane.f32.xlu0 %v1586
        %v1588 = vpop.xlane.xlu0 %1587
        %v1589 = vsel %vm1094, %v1549, 0.0
        %1590 = vadd.xlane.f32.xlu0 %v1589
        %v1591 = vpop.xlane.xlu0 %1590
        %v1592 = vsel %vm1094, %v1551, 0.0
        %1593 = vadd.xlane.f32.xlu0 %v1592
        %v1594 = vpop.xlane.xlu0 %1593
        %v1595 = vsel %vm1094, %v1553, 0.0
        %1596 = vadd.xlane.f32.xlu0 %v1595
        %v1597 = vpop.xlane.xlu0 %1596
        %v1598 = vsel %vm1094, %v1555, 0.0
        %1599 = vadd.xlane.f32.xlu0 %v1598
        %v1600 = vpop.xlane.xlu0 %1599
        %v1601 = vsel %vm1094, %v1557, 0.0
        %1602 = vadd.xlane.f32.xlu0 %v1601
        %v1603 = vpop.xlane.xlu0 %1602
        %v1604 = vsel %vm1094, %v1559, 0.0
        %1605 = vadd.xlane.f32.xlu0 %v1604
        %v1606 = vpop.xlane.xlu0 %1605
        %v1607 = vsel %vm1094, %v1561, 0.0
        %1608 = vadd.xlane.f32.xlu0 %v1607
        %v1609 = vpop.xlane.xlu0 %1608
        %v1610 = vrcp.pop %v1564
        %v1611 = vrcp.pop %v1567
        %v1612 = vrcp.pop %v1570
        %v1613 = vrcp.pop %v1573
        %v1614 = vrcp.pop %v1576
        %v1615 = vrcp.pop %v1579
        %v1616 = vrcp.pop %v1582
        %v1617 = vrcp.pop %v1585
        %v1618 = vrcp.pop %v1588
        %v1619 = vrcp.pop %v1591
        %v1620 = vrcp.pop %v1594
        %v1621 = vrcp.pop %v1597
        %v1622 = vrcp.pop %v1600
        %v1623 = vrcp.pop %v1603
        %v1624 = vrcp.pop %v1606
        %v1625 = vrcp.pop %v1609
        %v1626 = vmul.f32 %v1531, %v1610
        %v1627 = vmul.f32 %v1533, %v1611
        %v1628 = vmul.f32 %v1535, %v1612
        %v1629 = vmul.f32 %v1537, %v1613
        %v1630 = vmul.f32 %v1539, %v1614
        %v1631 = vmul.f32 %v1541, %v1615
        %v1632 = vmul.f32 %v1543, %v1616
        %v1633 = vmul.f32 %v1545, %v1617
        %v1634 = vmul.f32 %v1547, %v1618
        %v1635 = vmul.f32 %v1549, %v1619
        %v1636 = vmul.f32 %v1551, %v1620
        %v1637 = vmul.f32 %v1553, %v1621
        %v1638 = vmul.f32 %v1555, %v1622
        %v1639 = vmul.f32 %v1557, %v1623
        %v1640 = vmul.f32 %v1559, %v1624
        %v1641 = vmul.f32 %v1561, %v1625
        %v1642 = vpack.c.bf16 %v1627, %v1626
        %v1643 = vpack.c.bf16 %v1629, %v1628
        %v1644 = vpack.c.bf16 %v1631, %v1630
        %v1645 = vpack.c.bf16 %v1633, %v1632
        %v1646 = vpack.c.bf16 %v1635, %v1634
        %v1647 = vpack.c.bf16 %v1637, %v1636
        %v1648 = vpack.c.bf16 %v1639, %v1638
        %v1649 = vpack.c.bf16 %v1641, %v1640
        %v1650 = vpack.c.bf16 %v763, %v760
        %v1651 = vpack.c.bf16 %v771, %v768
        %v1652 = vpack.c.bf16 %v779, %v776
        %v1653 = vpack.c.bf16 %v787, %v784
        %v1654 = vpack.c.bf16 %v795, %v792
        %v1655 = vpack.c.bf16 %v803, %v800
        %v1656 = vpack.c.bf16 %v811, %v808
        %v1657 = vpack.c.bf16 %v819, %v816
        %v1659 = vsel %vm1094, %v1650, 0
        %v1662 = vsel %vm1094, %v1642, 0
        %1664 = vmatprep.subr.bf16.mxu0 0
        %1665 = vmatpush1.bf16.xpose.msra.mxu0 %v1662
        %1666 = vmatprep.subr.bf16.mxu0 0
        %1667 = vmatpush1.bf16.xpose.msra.mxu0 0
        %1668 = vmatprep.subr.bf16.mxu0 0
        %1669 = vmatpush1.bf16.xpose.msra.mxu0 0
        %1670 = vmatprep.subr.bf16.mxu0 0
        %1671 = vmatpush1.bf16.xpose.msra.mxu0 0
        %1672 = vmatprep.subr.bf16.mxu0 0
        %1673 = vmatpush1.bf16.xpose.msra.mxu0 0
        %1674 = vmatprep.subr.bf16.mxu0 0
        %1675 = vmatpush1.bf16.xpose.msra.mxu0 0
        %1676 = vmatprep.subr.bf16.mxu0 0
        %1677 = vmatpush1.bf16.xpose.msra.mxu0 0
        %1678 = vmatprep.subr.bf16.mxu0 0
        %1679 = vmatpush1.bf16.xpose.msra.mxu0 0
        %1680 = vmatprep.subr.bf16.mxu0 0
        %1681 = vmatpush1.bf16.xpose.msra.mxu0 0
        %1682 = vmatprep.subr.bf16.mxu0 0
        %1683 = vmatpush1.bf16.xpose.msra.mxu0 0
        %1684 = vmatprep.subr.bf16.mxu0 0
        %1685 = vmatpush1.bf16.xpose.msra.mxu0 0
        %1686 = vmatprep.subr.bf16.mxu0 0
        %1687 = vmatpush1.bf16.xpose.msra.mxu0 0
        %1688 = vmatprep.subr.bf16.mxu0 0
        %1689 = vmatpush1.bf16.xpose.msra.mxu0 0
        %1690 = vmatprep.subr.bf16.mxu0 0
        %1691 = vmatpush1.bf16.xpose.msra.mxu0 0
        %1692 = vmatprep.subr.bf16.mxu0 0
        %1693 = vmatpush1.bf16.xpose.msra.mxu0 0
        %1694 = vmatprep.subr.bf16.mxu0 0
        %1695 = vmatpush1.bf16.xpose.msra.mxu0 0
        %1696 = vmatprep.mubr.bf16.mxu0 0
        %1697 = vmatmul.mubr.bf16.gmra.mrb[0].mxu0 %v1659
        %v1698 = vpop.f32.mrb[0].mxu0
        %v1699 = vadd.f32 0.0, %v1698
        %v1700 = vpop.f32.mrb[0].mxu0
        %v1701 = vpop.f32.mrb[0].mxu0
        %v1702 = vadd.f32 0.0, %v1701
        %v1703 = vpop.f32.mrb[0].mxu0
        %1704 = vdwg.mxu0
        %v1706 = vsel %vm1094, %v1651, 0
        %v1709 = vsel %vm1094, %v1643, 0
        %1711 = vmatprep.subr.bf16.mxu0 0
        %1712 = vmatpush1.bf16.xpose.msra.mxu0 %v1709
        %1713 = vmatprep.subr.bf16.mxu0 0
        %1714 = vmatpush1.bf16.xpose.msra.mxu0 0
        %1715 = vmatprep.subr.bf16.mxu0 0
        %1716 = vmatpush1.bf16.xpose.msra.mxu0 0
        %1717 = vmatprep.subr.bf16.mxu0 0
        %1718 = vmatpush1.bf16.xpose.msra.mxu0 0
        %1719 = vmatprep.subr.bf16.mxu0 0
        %1720 = vmatpush1.bf16.xpose.msra.mxu0 0
        %1721 = vmatprep.subr.bf16.mxu0 0
        %1722 = vmatpush1.bf16.xpose.msra.mxu0 0
        %1723 = vmatprep.subr.bf16.mxu0 0
        %1724 = vmatpush1.bf16.xpose.msra.mxu0 0
        %1725 = vmatprep.subr.bf16.mxu0 0
        %1726 = vmatpush1.bf16.xpose.msra.mxu0 0
        %1727 = vmatprep.subr.bf16.mxu0 0
        %1728 = vmatpush1.bf16.xpose.msra.mxu0 0
        %1729 = vmatprep.subr.bf16.mxu0 0
        %1730 = vmatpush1.bf16.xpose.msra.mxu0 0
        %1731 = vmatprep.subr.bf16.mxu0 0
        %1732 = vmatpush1.bf16.xpose.msra.mxu0 0
        %1733 = vmatprep.subr.bf16.mxu0 0
        %1734 = vmatpush1.bf16.xpose.msra.mxu0 0
        %1735 = vmatprep.subr.bf16.mxu0 0
        %1736 = vmatpush1.bf16.xpose.msra.mxu0 0
        %1737 = vmatprep.subr.bf16.mxu0 0
        %1738 = vmatpush1.bf16.xpose.msra.mxu0 0
        %1739 = vmatprep.subr.bf16.mxu0 0
        %1740 = vmatpush1.bf16.xpose.msra.mxu0 0
        %1741 = vmatprep.subr.bf16.mxu0 0
        %1742 = vmatpush1.bf16.xpose.msra.mxu0 0
        %1743 = vmatprep.mubr.bf16.mxu0 0
        %1744 = vmatmul.mubr.bf16.gmra.mrb[0].mxu0 %v1706
        %v1745 = vpop.f32.mrb[0].mxu0
        %v1746 = vadd.f32 0.0, %v1745
        %v1747 = vpop.f32.mrb[0].mxu0
        %v1748 = vpop.f32.mrb[0].mxu0
        %v1749 = vadd.f32 0.0, %v1748
        %v1750 = vpop.f32.mrb[0].mxu0
        %1751 = vdwg.mxu0
        %v1753 = vsel %vm1094, %v1652, 0
        %v1756 = vsel %vm1094, %v1644, 0
        %1758 = vmatprep.subr.bf16.mxu0 0
        %1759 = vmatpush1.bf16.xpose.msra.mxu0 %v1756
        %1760 = vmatprep.subr.bf16.mxu0 0
        %1761 = vmatpush1.bf16.xpose.msra.mxu0 0
        %1762 = vmatprep.subr.bf16.mxu0 0
        %1763 = vmatpush1.bf16.xpose.msra.mxu0 0
        %1764 = vmatprep.subr.bf16.mxu0 0
        %1765 = vmatpush1.bf16.xpose.msra.mxu0 0
        %1766 = vmatprep.subr.bf16.mxu0 0
        %1767 = vmatpush1.bf16.xpose.msra.mxu0 0
        %1768 = vmatprep.subr.bf16.mxu0 0
        %1769 = vmatpush1.bf16.xpose.msra.mxu0 0
        %1770 = vmatprep.subr.bf16.mxu0 0
        %1771 = vmatpush1.bf16.xpose.msra.mxu0 0
        %1772 = vmatprep.subr.bf16.mxu0 0
        %1773 = vmatpush1.bf16.xpose.msra.mxu0 0
        %1774 = vmatprep.subr.bf16.mxu0 0
        %1775 = vmatpush1.bf16.xpose.msra.mxu0 0
        %1776 = vmatprep.subr.bf16.mxu0 0
        %1777 = vmatpush1.bf16.xpose.msra.mxu0 0
        %1778 = vmatprep.subr.bf16.mxu0 0
        %1779 = vmatpush1.bf16.xpose.msra.mxu0 0
        %1780 = vmatprep.subr.bf16.mxu0 0
        %1781 = vmatpush1.bf16.xpose.msra.mxu0 0
        %1782 = vmatprep.subr.bf16.mxu0 0
        %1783 = vmatpush1.bf16.xpose.msra.mxu0 0
        %1784 = vmatprep.subr.bf16.mxu0 0
        %1785 = vmatpush1.bf16.xpose.msra.mxu0 0
        %1786 = vmatprep.subr.bf16.mxu0 0
        %1787 = vmatpush1.bf16.xpose.msra.mxu0 0
        %1788 = vmatprep.subr.bf16.mxu0 0
        %1789 = vmatpush1.bf16.xpose.msra.mxu0 0
        %1790 = vmatprep.mubr.bf16.mxu0 0
        %1791 = vmatmul.mubr.bf16.gmra.mrb[0].mxu0 %v1753
        %v1792 = vpop.f32.mrb[0].mxu0
        %v1793 = vadd.f32 0.0, %v1792
        %v1794 = vpop.f32.mrb[0].mxu0
        %v1795 = vpop.f32.mrb[0].mxu0
        %v1796 = vadd.f32 0.0, %v1795
        %v1797 = vpop.f32.mrb[0].mxu0
        %1798 = vdwg.mxu0
        %v1800 = vsel %vm1094, %v1653, 0
        %v1803 = vsel %vm1094, %v1645, 0
        %1805 = vmatprep.subr.bf16.mxu0 0
        %1806 = vmatpush1.bf16.xpose.msra.mxu0 %v1803
        %1807 = vmatprep.subr.bf16.mxu0 0
        %1808 = vmatpush1.bf16.xpose.msra.mxu0 0
        %1809 = vmatprep.subr.bf16.mxu0 0
        %1810 = vmatpush1.bf16.xpose.msra.mxu0 0
        %1811 = vmatprep.subr.bf16.mxu0 0
        %1812 = vmatpush1.bf16.xpose.msra.mxu0 0
        %1813 = vmatprep.subr.bf16.mxu0 0
        %1814 = vmatpush1.bf16.xpose.msra.mxu0 0
        %1815 = vmatprep.subr.bf16.mxu0 0
        %1816 = vmatpush1.bf16.xpose.msra.mxu0 0
        %1817 = vmatprep.subr.bf16.mxu0 0
        %1818 = vmatpush1.bf16.xpose.msra.mxu0 0
        %1819 = vmatprep.subr.bf16.mxu0 0
        %1820 = vmatpush1.bf16.xpose.msra.mxu0 0
        %1821 = vmatprep.subr.bf16.mxu0 0
        %1822 = vmatpush1.bf16.xpose.msra.mxu0 0
        %1823 = vmatprep.subr.bf16.mxu0 0
        %1824 = vmatpush1.bf16.xpose.msra.mxu0 0
        %1825 = vmatprep.subr.bf16.mxu0 0
        %1826 = vmatpush1.bf16.xpose.msra.mxu0 0
        %1827 = vmatprep.subr.bf16.mxu0 0
        %1828 = vmatpush1.bf16.xpose.msra.mxu0 0
        %1829 = vmatprep.subr.bf16.mxu0 0
        %1830 = vmatpush1.bf16.xpose.msra.mxu0 0
        %1831 = vmatprep.subr.bf16.mxu0 0
        %1832 = vmatpush1.bf16.xpose.msra.mxu0 0
        %1833 = vmatprep.subr.bf16.mxu0 0
        %1834 = vmatpush1.bf16.xpose.msra.mxu0 0
        %1835 = vmatprep.subr.bf16.mxu0 0
        %1836 = vmatpush1.bf16.xpose.msra.mxu0 0
        %1837 = vmatprep.mubr.bf16.mxu0 0
        %1838 = vmatmul.mubr.bf16.gmra.mrb[0].mxu0 %v1800
        %v1839 = vpop.f32.mrb[0].mxu0
        %v1840 = vadd.f32 0.0, %v1839
        %v1841 = vpop.f32.mrb[0].mxu0
        %v1842 = vpop.f32.mrb[0].mxu0
        %v1843 = vadd.f32 0.0, %v1842
        %v1844 = vpop.f32.mrb[0].mxu0
        %1845 = vdwg.mxu0
        %v1847 = vsel %vm1094, %v1654, 0
        %v1850 = vsel %vm1094, %v1646, 0
        %1852 = vmatprep.subr.bf16.mxu0 0
        %1853 = vmatpush1.bf16.xpose.msra.mxu0 %v1850
        %1854 = vmatprep.subr.bf16.mxu0 0
        %1855 = vmatpush1.bf16.xpose.msra.mxu0 0
        %1856 = vmatprep.subr.bf16.mxu0 0
        %1857 = vmatpush1.bf16.xpose.msra.mxu0 0
        %1858 = vmatprep.subr.bf16.mxu0 0
        %1859 = vmatpush1.bf16.xpose.msra.mxu0 0
        %1860 = vmatprep.subr.bf16.mxu0 0
        %1861 = vmatpush1.bf16.xpose.msra.mxu0 0
        %1862 = vmatprep.subr.bf16.mxu0 0
        %1863 = vmatpush1.bf16.xpose.msra.mxu0 0
        %1864 = vmatprep.subr.bf16.mxu0 0
        %1865 = vmatpush1.bf16.xpose.msra.mxu0 0
        %1866 = vmatprep.subr.bf16.mxu0 0
        %1867 = vmatpush1.bf16.xpose.msra.mxu0 0
        %1868 = vmatprep.subr.bf16.mxu0 0
        %1869 = vmatpush1.bf16.xpose.msra.mxu0 0
        %1870 = vmatprep.subr.bf16.mxu0 0
        %1871 = vmatpush1.bf16.xpose.msra.mxu0 0
        %1872 = vmatprep.subr.bf16.mxu0 0
        %1873 = vmatpush1.bf16.xpose.msra.mxu0 0
        %1874 = vmatprep.subr.bf16.mxu0 0
        %1875 = vmatpush1.bf16.xpose.msra.mxu0 0
        %1876 = vmatprep.subr.bf16.mxu0 0
        %1877 = vmatpush1.bf16.xpose.msra.mxu0 0
        %1878 = vmatprep.subr.bf16.mxu0 0
        %1879 = vmatpush1.bf16.xpose.msra.mxu0 0
        %1880 = vmatprep.subr.bf16.mxu0 0
        %1881 = vmatpush1.bf16.xpose.msra.mxu0 0
        %1882 = vmatprep.subr.bf16.mxu0 0
        %1883 = vmatpush1.bf16.xpose.msra.mxu0 0
        %1884 = vmatprep.mubr.bf16.mxu0 0
        %1885 = vmatmul.mubr.bf16.gmra.mrb[0].mxu0 %v1847
        %v1886 = vpop.f32.mrb[0].mxu0
        %v1887 = vadd.f32 0.0, %v1886
        %v1888 = vpop.f32.mrb[0].mxu0
        %v1889 = vpop.f32.mrb[0].mxu0
        %v1890 = vadd.f32 0.0, %v1889
        %v1891 = vpop.f32.mrb[0].mxu0
        %1892 = vdwg.mxu0
        %v1894 = vsel %vm1094, %v1655, 0
        %v1897 = vsel %vm1094, %v1647, 0
        %1899 = vmatprep.subr.bf16.mxu0 0
        %1900 = vmatpush1.bf16.xpose.msra.mxu0 %v1897
        %1901 = vmatprep.subr.bf16.mxu0 0
        %1902 = vmatpush1.bf16.xpose.msra.mxu0 0
        %1903 = vmatprep.subr.bf16.mxu0 0
        %1904 = vmatpush1.bf16.xpose.msra.mxu0 0
        %1905 = vmatprep.subr.bf16.mxu0 0
        %1906 = vmatpush1.bf16.xpose.msra.mxu0 0
        %1907 = vmatprep.subr.bf16.mxu0 0
        %1908 = vmatpush1.bf16.xpose.msra.mxu0 0
        %1909 = vmatprep.subr.bf16.mxu0 0
        %1910 = vmatpush1.bf16.xpose.msra.mxu0 0
        %1911 = vmatprep.subr.bf16.mxu0 0
        %1912 = vmatpush1.bf16.xpose.msra.mxu0 0
        %1913 = vmatprep.subr.bf16.mxu0 0
        %1914 = vmatpush1.bf16.xpose.msra.mxu0 0
        %1915 = vmatprep.subr.bf16.mxu0 0
        %1916 = vmatpush1.bf16.xpose.msra.mxu0 0
        %1917 = vmatprep.subr.bf16.mxu0 0
        %1918 = vmatpush1.bf16.xpose.msra.mxu0 0
        %1919 = vmatprep.subr.bf16.mxu0 0
        %1920 = vmatpush1.bf16.xpose.msra.mxu0 0
        %1921 = vmatprep.subr.bf16.mxu0 0
        %1922 = vmatpush1.bf16.xpose.msra.mxu0 0
        %1923 = vmatprep.subr.bf16.mxu0 0
        %1924 = vmatpush1.bf16.xpose.msra.mxu0 0
        %1925 = vmatprep.subr.bf16.mxu0 0
        %1926 = vmatpush1.bf16.xpose.msra.mxu0 0
        %1927 = vmatprep.subr.bf16.mxu0 0
        %1928 = vmatpush1.bf16.xpose.msra.mxu0 0
        %1929 = vmatprep.subr.bf16.mxu0 0
        %1930 = vmatpush1.bf16.xpose.msra.mxu0 0
        %1931 = vmatprep.mubr.bf16.mxu0 0
        %1932 = vmatmul.mubr.bf16.gmra.mrb[0].mxu0 %v1894
        %v1933 = vpop.f32.mrb[0].mxu0
        %v1934 = vadd.f32 0.0, %v1933
        %v1935 = vpop.f32.mrb[0].mxu0
        %v1936 = vpop.f32.mrb[0].mxu0
        %v1937 = vadd.f32 0.0, %v1936
        %v1938 = vpop.f32.mrb[0].mxu0
        %1939 = vdwg.mxu0
        %v1941 = vsel %vm1094, %v1656, 0
        %v1944 = vsel %vm1094, %v1648, 0
        %1946 = vmatprep.subr.bf16.mxu0 0
        %1947 = vmatpush1.bf16.xpose.msra.mxu0 %v1944
        %1948 = vmatprep.subr.bf16.mxu0 0
        %1949 = vmatpush1.bf16.xpose.msra.mxu0 0
        %1950 = vmatprep.subr.bf16.mxu0 0
        %1951 = vmatpush1.bf16.xpose.msra.mxu0 0
        %1952 = vmatprep.subr.bf16.mxu0 0
        %1953 = vmatpush1.bf16.xpose.msra.mxu0 0
        %1954 = vmatprep.subr.bf16.mxu0 0
        %1955 = vmatpush1.bf16.xpose.msra.mxu0 0
        %1956 = vmatprep.subr.bf16.mxu0 0
        %1957 = vmatpush1.bf16.xpose.msra.mxu0 0
        %1958 = vmatprep.subr.bf16.mxu0 0
        %1959 = vmatpush1.bf16.xpose.msra.mxu0 0
        %1960 = vmatprep.subr.bf16.mxu0 0
        %1961 = vmatpush1.bf16.xpose.msra.mxu0 0
        %1962 = vmatprep.subr.bf16.mxu0 0
        %1963 = vmatpush1.bf16.xpose.msra.mxu0 0
        %1964 = vmatprep.subr.bf16.mxu0 0
        %1965 = vmatpush1.bf16.xpose.msra.mxu0 0
        %1966 = vmatprep.subr.bf16.mxu0 0
        %1967 = vmatpush1.bf16.xpose.msra.mxu0 0
        %1968 = vmatprep.subr.bf16.mxu0 0
        %1969 = vmatpush1.bf16.xpose.msra.mxu0 0
        %1970 = vmatprep.subr.bf16.mxu0 0
        %1971 = vmatpush1.bf16.xpose.msra.mxu0 0
        %1972 = vmatprep.subr.bf16.mxu0 0
        %1973 = vmatpush1.bf16.xpose.msra.mxu0 0
        %1974 = vmatprep.subr.bf16.mxu0 0
        %1975 = vmatpush1.bf16.xpose.msra.mxu0 0
        %1976 = vmatprep.subr.bf16.mxu0 0
        %1977 = vmatpush1.bf16.xpose.msra.mxu0 0
        %1978 = vmatprep.mubr.bf16.mxu0 0
        %1979 = vmatmul.mubr.bf16.gmra.mrb[0].mxu0 %v1941
        %v1980 = vpop.f32.mrb[0].mxu0
        %v1981 = vadd.f32 0.0, %v1980
        %v1982 = vpop.f32.mrb[0].mxu0
        %v1983 = vpop.f32.mrb[0].mxu0
        %v1984 = vadd.f32 0.0, %v1983
        %v1985 = vpop.f32.mrb[0].mxu0
        %1986 = vdwg.mxu0
        %v1988 = vsel %vm1094, %v1657, 0
        %v1991 = vsel %vm1094, %v1649, 0
        %1993 = vmatprep.subr.bf16.mxu0 0
        %1994 = vmatpush1.bf16.xpose.msra.mxu0 %v1991
        %1995 = vmatprep.subr.bf16.mxu0 0
        %1996 = vmatpush1.bf16.xpose.msra.mxu0 0
        %1997 = vmatprep.subr.bf16.mxu0 0
        %1998 = vmatpush1.bf16.xpose.msra.mxu0 0
        %1999 = vmatprep.subr.bf16.mxu0 0
        %2000 = vmatpush1.bf16.xpose.msra.mxu0 0
        %2001 = vmatprep.subr.bf16.mxu0 0
        %2002 = vmatpush1.bf16.xpose.msra.mxu0 0
        %2003 = vmatprep.subr.bf16.mxu0 0
        %2004 = vmatpush1.bf16.xpose.msra.mxu0 0
        %2005 = vmatprep.subr.bf16.mxu0 0
        %2006 = vmatpush1.bf16.xpose.msra.mxu0 0
        %2007 = vmatprep.subr.bf16.mxu0 0
        %2008 = vmatpush1.bf16.xpose.msra.mxu0 0
        %2009 = vmatprep.subr.bf16.mxu0 0
        %2010 = vmatpush1.bf16.xpose.msra.mxu0 0
        %2011 = vmatprep.subr.bf16.mxu0 0
        %2012 = vmatpush1.bf16.xpose.msra.mxu0 0
        %2013 = vmatprep.subr.bf16.mxu0 0
        %2014 = vmatpush1.bf16.xpose.msra.mxu0 0
        %2015 = vmatprep.subr.bf16.mxu0 0
        %2016 = vmatpush1.bf16.xpose.msra.mxu0 0
        %2017 = vmatprep.subr.bf16.mxu0 0
        %2018 = vmatpush1.bf16.xpose.msra.mxu0 0
        %2019 = vmatprep.subr.bf16.mxu0 0
        %2020 = vmatpush1.bf16.xpose.msra.mxu0 0
        %2021 = vmatprep.subr.bf16.mxu0 0
        %2022 = vmatpush1.bf16.xpose.msra.mxu0 0
        %2023 = vmatprep.subr.bf16.mxu0 0
        %2024 = vmatpush1.bf16.xpose.msra.mxu0 0
        %2025 = vmatprep.mubr.bf16.mxu0 0
        %2026 = vmatmul.mubr.bf16.gmra.mrb[0].mxu0 %v1988
        %v2027 = vpop.f32.mrb[0].mxu0
        %v2028 = vadd.f32 0.0, %v2027
        %v2029 = vpop.f32.mrb[0].mxu0
        %v2030 = vpop.f32.mrb[0].mxu0
        %v2031 = vadd.f32 0.0, %v2030
        %v2032 = vpop.f32.mrb[0].mxu0
        %2033 = vdwg.mxu0
        %2034 = vxpose.xlu0.b32.start [1/16] %v1699, 128
        %2035 = vxpose.xlu0.b32.cont [2/16] %v1702, 128
        %2036 = vxpose.xlu0.b32.cont [3/16] %v1746, 128
        %2037 = vxpose.xlu0.b32.cont [4/16] %v1749, 128
        %2038 = vxpose.xlu0.b32.cont [5/16] %v1793, 128
        %2039 = vxpose.xlu0.b32.cont [6/16] %v1796, 128
        %2040 = vxpose.xlu0.b32.cont [7/16] %v1840, 128
        %2041 = vxpose.xlu0.b32.cont [8/16] %v1843, 128
        %2042 = vxpose.xlu0.b32.cont [9/16] %v1887, 128
        %2043 = vxpose.xlu0.b32.cont [10/16] %v1890, 128
        %2044 = vxpose.xlu0.b32.cont [11/16] %v1934, 128
        %2045 = vxpose.xlu0.b32.cont [12/16] %v1937, 128
        %2046 = vxpose.xlu0.b32.cont [13/16] %v1981, 128
        %2047 = vxpose.xlu0.b32.cont [14/16] %v1984, 128
        %2048 = vxpose.xlu0.b32.cont [15/16] %v2028, 128
        %2049 = vxpose.xlu0.b32.end [16/16] %v2031, 128
        %v2050 = vpop.trf.xlu0
        %v2051 = vpop.trf.xlu0
        %v2052 = vpop.trf.xlu0
        %v2053 = vpop.trf.xlu0
        %v2054 = vpop.trf.xlu0
        %v2055 = vpop.trf.xlu0
        %v2056 = vpop.trf.xlu0
        %v2057 = vpop.trf.xlu0
        %v2058 = vpop.trf.xlu0
        %v2059 = vpop.trf.xlu0
        %v2060 = vpop.trf.xlu0
        %v2061 = vpop.trf.xlu0
        %v2062 = vpop.trf.xlu0
        %v2063 = vpop.trf.xlu0
        %v2064 = vpop.trf.xlu0
        %v2065 = vpop.trf.xlu0
        %v2066 = vpack.c.bf16 %v2051, %v2050
        %v2067 = vld [vmem:[#allocation10] sm:$0xf]
        %v2068 = vld [vmem:[#allocation10 + $0x4] sm:$0xf]
        %v2069 = vld [vmem:[#allocation10 + $0x8] sm:$0xf]
        %v2070 = vld [vmem:[#allocation10 + $0xc] sm:$0xf]
        %v2071 = vld [vmem:[#allocation10 + $0x10] sm:$0xf]
        %v2072 = vld [vmem:[#allocation10 + $0x14] sm:$0xf]
        %v2073 = vld [vmem:[#allocation10 + $0x18] sm:$0xf]
        %v2074 = vld [vmem:[#allocation10 + $0x1c] sm:$0xf]
        %v2075 = vld [vmem:[#allocation10 + $0x20] sm:$0xf]
        %v2076 = vld [vmem:[#allocation10 + $0x24] sm:$0xf]
        %v2077 = vld [vmem:[#allocation10 + $0x28] sm:$0xf]
        %v2078 = vld [vmem:[#allocation10 + $0x2c] sm:$0xf]
        %v2079 = vld [vmem:[#allocation10 + $0x30] sm:$0xf]
        %v2080 = vld [vmem:[#allocation10 + $0x34] sm:$0xf]
        %v2081 = vld [vmem:[#allocation10 + $0x38] sm:$0xf]
        %v2082 = vld [vmem:[#allocation10 + $0x3c] sm:$0xf]
        %v2083 = vld [vmem:[%s5] sm:$0x1]
        %v2085 = vlaneseq
        %v2086 = vshrl.u32 %v2085, 7
        %v2087 = vsub.s32 0, %v2086
        %v2088 = vrot.slane %v2083, %v2087
        %v2106 = vunpack.c.l.b16 %v2067
        %v2107 = vunpack.c.l.b16 %v2068
        %v2108 = vunpack.c.l.b16 %v2069
        %v2109 = vunpack.c.l.b16 %v2070
        %v2110 = vunpack.c.l.b16 %v2071
        %v2111 = vunpack.c.l.b16 %v2072
        %v2112 = vunpack.c.l.b16 %v2073
        %v2113 = vunpack.c.l.b16 %v2074
        %v2114 = vunpack.c.l.b16 %v2075
        %v2115 = vunpack.c.l.b16 %v2076
        %v2116 = vunpack.c.l.b16 %v2077
        %v2117 = vunpack.c.l.b16 %v2078
        %v2118 = vunpack.c.l.b16 %v2079
        %v2119 = vunpack.c.l.b16 %v2080
        %v2120 = vunpack.c.l.b16 %v2081
        %v2121 = vunpack.c.l.b16 %v2082
        %v2122 = vpack.c.b16 %v2107, %v2106
        %v2123 = vpack.c.b16 %v2109, %v2108
        %v2124 = vpack.c.b16 %v2111, %v2110
        %v2125 = vpack.c.b16 %v2113, %v2112
        %v2126 = vpack.c.b16 %v2115, %v2114
        %v2127 = vpack.c.b16 %v2117, %v2116
        %v2128 = vpack.c.b16 %v2119, %v2118
        %v2129 = vpack.c.b16 %v2121, %v2120
        %2138 = vmatprep.subr.bf16.mxu0 0
        %2139 = vmatpush1.bf16.msra.mxu0 %v2122
        %2140 = vmatprep.subr.bf16.mxu0 0
        %2141 = vmatpush1.bf16.msra.mxu0 %v2123
        %2142 = vmatprep.subr.bf16.mxu0 0
        %2143 = vmatpush1.bf16.msra.mxu0 %v2124
        %2144 = vmatprep.subr.bf16.mxu0 0
        %2145 = vmatpush1.bf16.msra.mxu0 %v2125
        %2146 = vmatprep.subr.bf16.mxu0 0
        %2147 = vmatpush1.bf16.msra.mxu0 %v2126
        %2148 = vmatprep.subr.bf16.mxu0 0
        %2149 = vmatpush1.bf16.msra.mxu0 %v2127
        %2150 = vmatprep.subr.bf16.mxu0 0
        %2151 = vmatpush1.bf16.msra.mxu0 %v2128
        %2152 = vmatprep.subr.bf16.mxu0 0
        %2153 = vmatpush1.bf16.msra.mxu0 %v2129
        %2154 = vmatprep.subr.bf16.mxu0 0
        %2155 = vmatpush1.bf16.msra.mxu0 0
        %2156 = vmatprep.subr.bf16.mxu0 0
        %2157 = vmatpush1.bf16.msra.mxu0 0
        %2158 = vmatprep.subr.bf16.mxu0 0
        %2159 = vmatpush1.bf16.msra.mxu0 0
        %2160 = vmatprep.subr.bf16.mxu0 0
        %2161 = vmatpush1.bf16.msra.mxu0 0
        %2162 = vmatprep.subr.bf16.mxu0 0
        %2163 = vmatpush1.bf16.msra.mxu0 0
        %2164 = vmatprep.subr.bf16.mxu0 0
        %2165 = vmatpush1.bf16.msra.mxu0 0
        %2166 = vmatprep.subr.bf16.mxu0 0
        %2167 = vmatpush1.bf16.msra.mxu0 0
        %2168 = vmatprep.subr.bf16.mxu0 0
        %2169 = vmatpush1.bf16.msra.mxu0 0
        %2170 = vmatprep.mubr.bf16.mxu0 0
        %2171 = vmatmul.mubr.bf16.gmra.mrb[0].mxu0 %v2066
        %v2172 = vpop.f32.mrb[0].mxu0
        %v2173 = vadd.f32 %v2088, %v2172
        %v2174 = vpop.f32.mrb[0].mxu0
        %v2175 = vpop.f32.mrb[0].mxu0
        %v2176 = vadd.f32 %v2088, %v2175
        %v2177 = vpop.f32.mrb[0].mxu0
        %2178 = vdwg.mxu0
        %2179 = vst [vmem:[%s327] sm:$0xff] %v2173
        %2180 = vst [vmem:[%s327 + $0x8] sm:$0xff] %v2176
        %s2181 = sand.u32 %s164, 1
        %s2182 = scalar_lea.sflag [#allocation4], %s2181
        %s2183 = sand.u32 %s164, 1
        %s2184 = smul.addr %s2183, 16
        %s2185 = scalar_lea.vmem [#allocation11], %s2184
        // Predicated region
        $region65: #{tpu_custom_call.1} parent=43 // pred_check
          %p2186 = pneg %p174
        $region66: #{tpu_custom_call.1} parent=43 // pred_check_branch
          %2188 = sbr.rel (%p2186) target = $region68
        $region67: #{tpu_custom_call.1} parent=43 // pred_region
          %s2189 = smul.u32 2, %s25
          %s2191 = ssub.s32 256, 256
          %2192 = vsyncadd %s2182, %s2191
          %s2193 = smul.addr %s2189, 128
          %s2194 = scalar_lea.hbm %s6, %s2193
          %s2195 = sshll.u32 %s2185, 4
          %s2196 = int_to_ptr.vmem [resolvable:$true] %s2195
          %2201 = dma.vmem_to_hbm [thread:$0]  %s2196, 256, %s2194, %s2182, 128, 128, 8
        $region68: #{tpu_custom_call.1} parent=43 // pred_fallthru
          _
      $region44: #{tpu_custom_call.1} parent=5 // pred_fallthru
        _
      %p2202 = scmp.le.s32.totalorder 2, %s20
      // Predicated region
      $region69: #{tpu_custom_call.1} parent=5 // pred_check
        %p2203 = pneg %p2202
      $region70: #{tpu_custom_call.1} parent=5 // pred_check_branch
        %2205 = sbr.rel (%p2203) target = $region72
      $region71: #{tpu_custom_call.1} parent=5 // pred_region
        %s2206 = ssub.s32 %s20, 2
        // Predicated region
        $region73: #{tpu_custom_call.1} parent=71 // pred_check
          %p2207 = pneg %p180
        $region74: #{tpu_custom_call.1} parent=71 // pred_check_branch
          %2209 = sbr.rel (%p2207) target = $region76
        $region75: #{tpu_custom_call.1} parent=71 // pred_region
          %s2210 = sand.u32 %s165, 1
          %s2211 = scalar_lea.sflag [#allocation4], %s2210
          %s2212 = sand.u32 %s165, 1
          %s2213 = smul.addr %s2212, 16
          %s2214 = scalar_lea.vmem [#allocation11], %s2213
          %2215 = dma.done %s2211, 256
        $region76: #{tpu_custom_call.1} parent=71 // pred_fallthru
          _
      $region72: #{tpu_custom_call.1} parent=5 // pred_fallthru
        _
    $region6: #{tpu_custom_call.1} parent=1 // loop_footer
      %s24 = sadd.s32 1, %s20
    $region7: #{tpu_custom_call.1} parent=1 // loop_footer_branch
      %19 = sbr.rel target = $region3
    $region8: #{tpu_custom_call.1} parent=1 // loop_exit
      _
    %2216 = vsyncpa [#allocation3], 1
    %s2217 = scalar_lea.sflag [#allocation3], 1
    %2218 = vsyncpa %s2217, 1
    %2219 = vsyncpa [#allocation6], 1
    %2220 = vsyncpa [#allocation9], 1
    %2221 = vsyncpa [#allocation4], 1
    %s2222 = scalar_lea.sflag [#allocation4], 1
    %2223 = vsyncpa %s2222, 1

</llo_original>
